<compile_context>
chip_gen: v6e
topology: v6e:2x2x1
jax: 0.10.0
libtpu: 0.0.40
codegen_flags: <defaults>
</compile_context>

<pallas_src>
import numpy as np
import jax
import jax.numpy as jnp
from jax.experimental import pallas as pl
from jax.experimental.pallas import tpu as pltpu

C = 3            # image channels
H = 32           # frame height
W = 128          # frame width (lane dim of the score map)
OH = 16          # image_size[0] (small stand-in for 380)
OW = 16          # image_size[1]
WC = W * C       # 384 : lane width of the HWC input slab
OWC = OW * C     # 48  : true lane width of the HWC output slab
OWC_PAD = 128    # padded output lane width -> lane-dense stores (no vst.msk)

# ---------------------------------------------------------------------------
# Host-precomputed static index/mask tensors (crop-independent).  These
# replace the in-kernel broadcasted_iota + magic-div3 chains flagged by the
# perf review (~200 KiB of constant DMA instead of hundreds of VALU issues).
# ---------------------------------------------------------------------------
_J = np.arange(WC)
_O = np.arange(OWC_PAD)
_XS_FULL = np.broadcast_to((_J // 3).astype(np.float32)[:, None],
                           (WC, OWC_PAD)).copy()              # src pixel per row
_DIAG_MASK = (((_J % 3)[:, None] == (_O % 3)[None, :])
              & (_O[None, :] < OWC)).astype(np.float32)       # channel block-diag (+pad zeroing)
_XO_ROW = (_O // 3).astype(np.float32)[None, :]               # out pixel per lane
_FLAT_IDX = (np.arange(H)[:, None] * W
             + np.arange(W)[None, :]).astype(np.float32)      # row-major flat idx


def retina_get_face_kernel(frame_ref, wsel_ref, xs_ref, diag_ref, xo_ref,
                           flat_ref, wscore_ref, wbox_ref, out_ref):
    f32 = jnp.float32
    frame = frame_ref[...]                                    # (H, W*C) HWC slab

    # ------------------------------------------------------------------
    # 1) synthetic detector head: per-pixel score map via ONE MXU matmul.
    # TODO(synk): stands in for the pretrained RetinaFace resnet50
    # (model.predict_jsons); the real checkpoint cannot be reproduced here.
    # DEFAULT precision (single bf16 pass): argmax stays correct as long as
    # the top score is separated by >> 1% of its magnitude (a face peak).
    # ------------------------------------------------------------------
    score = jnp.dot(frame, wsel_ref[...], preferred_element_type=f32) \
        + wscore_ref[C]                                       # (H, W)

    smax = jnp.max(score)                                     # serial reduce #1
    big = f32(H * W)
    # row-major first-hit tie-break == np.argmax                 serial reduce #2
    arg_f = jnp.min(jnp.where(score >= smax, flat_ref[...], big))
    y0f = jnp.floor(arg_f / f32(W))                           # exact: W = 2**7
    x0f = arg_f - y0f * f32(W)
    y0i = y0f.astype(jnp.int32)

    # Argmax-pixel gather, two-stage (exact): one sublane reduce to the row,
    # then three tiny lane-masked sums for the channels.
    row_iota = jax.lax.broadcasted_iota(jnp.int32, (H, 1), 0)
    rowvec = jnp.sum(frame * (row_iota == y0i).astype(f32),
                     axis=0, keepdims=True)                   # (1, W*C) == frame[y0]
    lane_iota = jax.lax.broadcasted_iota(jnp.int32, (1, WC), 1)
    base_i = (x0f * 3.0).astype(jnp.int32)
    feats = [jnp.sum(rowvec * (lane_iota == base_i + c).astype(f32))
             for c in range(C)]

    # TODO(synk): the 4 scalar tanh/sigmoid EUP pushes below could be packed
    # into 2 vector transcendentals, but that needs vector->scalar extraction;
    # they are mutually independent scalars and tiny in absolute cost.
    deltas = []
    for k in range(4):
        acc = feats[0] * wbox_ref[0 * 4 + k] + feats[1] * wbox_ref[1 * 4 + k]
        acc = acc + feats[2] * wbox_ref[2 * 4 + k]
        deltas.append(wbox_ref[C * 4 + k] + acc)

    xc = x0f + jnp.tanh(deltas[2]) * 2.0
    yc = y0f + jnp.tanh(deltas[3]) * 2.0
    half_w = 2.0 + jax.nn.sigmoid(deltas[0]) * (W / 6.0)
    half_h = 2.0 + jax.nn.sigmoid(deltas[1]) * (H / 6.0)
    x0 = jnp.clip(xc - half_w, 0.0, float(W - 1))
    x1 = jnp.clip(xc + half_w, 0.0, float(W - 1))
    y0 = jnp.clip(yc - half_h, 0.0, float(H - 1))
    y1 = jnp.clip(yc + half_h, 0.0, float(H - 1))

    # ------------------------------------------------------------------
    # 2) crop_face: crop_by_bbox=True, margin=False, phase='test'
    # ------------------------------------------------------------------
    w = x1 - x0
    h = y1 - y0
    w_m = (w / 4.0) * 0.5
    h_m = (h / 4.0) * 0.5
    # int() truncation == floor on the positive branch; the negative branch is
    # clamped to 0 anyway, so floor is exactly equivalent here.
    y0n = jnp.maximum(jnp.int32(0), jnp.floor(y0 - h_m).astype(jnp.int32))
    y1n = jnp.minimum(jnp.int32(H), jnp.floor(y1 + h_m).astype(jnp.int32) + 1)
    x0n = jnp.maximum(jnp.int32(0), jnp.floor(x0 - w_m).astype(jnp.int32))
    x1n = jnp.minimum(jnp.int32(W), jnp.floor(x1 + w_m).astype(jnp.int32) + 1)
    hcf = (y1n - y0n).astype(f32)                             # crop height
    wcf = (x1n - x0n).astype(f32)                             # crop width
    y0nf = y0n.astype(f32)
    x0nf = x0n.astype(f32)

    # ------------------------------------------------------------------
    # 3) cv2.resize(crop, (OW, OH), INTER_LINEAR) as TWO lane-dense MXU
    #    matmuls on the HWC slab: out = Ry @ frame @ Rx_bd.
    # TODO(synk): cv2 resizes uint8 with fixed-point rounding; float32 here.
    # NOTE (production sizes, per review): tile the resize over output-row
    # blocks, restrict the contraction to the crop window (pl.ds on the frame
    # slab with a pl.multiple_of-aligned K = wc*C) so the mostly-zero
    # block-diagonal Rx is never materialized in full; set vmem_limit_bytes
    # explicitly (v5e 16 MiB scoped default, v7x 32 MiB scoped / 64 MiB
    # physical); on v6e/v7x stack several frames' OH rows into M to fill the
    # 256x256 MXU.
    # ------------------------------------------------------------------
    # vertical interpolation matrix Ry: (OH, H) -- tiny, built in-kernel
    oi_col = jax.lax.broadcasted_iota(jnp.int32, (OH, 1), 0).astype(f32)
    si_row = jax.lax.broadcasted_iota(jnp.int32, (1, H), 1).astype(f32)
    sy = jnp.clip((oi_col + 0.5) * (hcf / f32(OH)) - 0.5, 0.0, hcf - 1.0)
    iy0 = jnp.floor(sy)
    fy = sy - iy0
    iy1 = jnp.minimum(iy0 + 1.0, hcf - 1.0)
    ry = ((si_row == y0nf + iy0).astype(f32) * (1.0 - fy)
          + (si_row == y0nf + iy1).astype(f32) * fy)          # (OH, H)

    # horizontal interpolation, block-diagonal per channel: (W*C, OWC_PAD)
    xo = xo_ref[...]                                          # (1, OWC_PAD)
    sx = jnp.clip((xo + 0.5) * (wcf / f32(OW)) - 0.5, 0.0, wcf - 1.0)
    ix0 = jnp.floor(sx)
    fx = sx - ix0
    ix1 = jnp.minimum(ix0 + 1.0, wcf - 1.0)
    xs = xs_ref[...]                                          # (W*C, OWC_PAD)
    rx = ((xs == x0nf + ix0).astype(f32) * (1.0 - fx)
          + (xs == x0nf + ix1).astype(f32) * fx) * diag_ref[...]

    # Two lane-dense DEFAULT-precision matmuls (single bf16 MXU pass each).
    tmp = jnp.dot(ry, frame, preferred_element_type=f32)      # (OH, W*C)
    out_ref[...] = jnp.dot(tmp, rx, preferred_element_type=f32)  # (OH, OWC_PAD)


@jax.jit
def retina_get_face(frames_hwc, w_score, w_box):
    """frames_hwc: (B, H, W, C) float32 HWC frames. Returns (B, OH, OW, C) f32."""
    B = frames_hwc.shape[0]
    frames_flat = frames_hwc.astype(jnp.float32).reshape(B, H, WC)  # free reshape

    # Channel-combine matrix for the score matmul (depends only on w_score).
    x_of_j = jnp.asarray(_J // 3, jnp.int32)
    c_of_j = jnp.asarray(_J % 3, jnp.int32)
    cols = jnp.arange(W, dtype=jnp.int32)
    wsel = jnp.where(x_of_j[:, None] == cols[None, :],
                     w_score.astype(jnp.float32)[c_of_j][:, None],
                     0.0).astype(jnp.float32)                        # (W*C, W)

    xs_full = jnp.asarray(_XS_FULL)
    diag = jnp.asarray(_DIAG_MASK)
    xo_row = jnp.asarray(_XO_ROW)
    flat_idx = jnp.asarray(_FLAT_IDX)

    flops = B * 2 * (H * WC * W + OH * H * WC + OH * WC * OWC_PAD)
    bytes_accessed = 4 * (B * H * WC + WC * W + 2 * WC * OWC_PAD + OWC_PAD
                          + H * W + B * OH * OWC_PAD + 5 * (C + 1))

    out_flat = pl.pallas_call(
        retina_get_face_kernel,
        out_shape=jax.ShapeDtypeStruct((B, OH, OWC_PAD), jnp.float32),
        grid=(B,),
        in_specs=[
            pl.BlockSpec((None, H, WC), lambda b: (b, 0, 0)),        # per-frame slab
            pl.BlockSpec((WC, W), lambda b: (0, 0)),                 # wsel
            pl.BlockSpec((WC, OWC_PAD), lambda b: (0, 0)),           # xs_full
            pl.BlockSpec((WC, OWC_PAD), lambda b: (0, 0)),           # diag mask
            pl.BlockSpec((1, OWC_PAD), lambda b: (0, 0)),            # xo_row
            pl.BlockSpec((H, W), lambda b: (0, 0)),                  # flat idx
            pl.BlockSpec(memory_space=pltpu.MemorySpace.SMEM),       # score head params
            pl.BlockSpec(memory_space=pltpu.MemorySpace.SMEM),       # box head params
        ],
        out_specs=pl.BlockSpec((None, OH, OWC_PAD), lambda b: (b, 0, 0)),
        compiler_params=pltpu.CompilerParams(
            dimension_semantics=("parallel",)),
        cost_estimate=pl.CostEstimate(flops=flops, transcendentals=4 * B,
                                      bytes_accessed=bytes_accessed),
    )(frames_flat, wsel, xs_full, diag, xo_row, flat_idx,
      w_score.astype(jnp.float32), w_box.astype(jnp.float32))

    # drop the lane padding; free row-major reshape back to HWC
    return out_flat[:, :, :OWC].reshape(B, OH, OW, C)


# ---------------------------------------------------------------------------
# Pure numpy reference (independent: direct crop + gather-based bilinear)
# ---------------------------------------------------------------------------
def ref_forward(frame_hwc, w_score, w_box):
    f32 = np.float32
    fr = np.transpose(np.asarray(frame_hwc, f32), (2, 0, 1))   # CHW planes
    ws = np.asarray(w_score, f32)
    wb = np.asarray(w_box, f32)

    score = fr[0] * ws[0] + fr[1] * ws[1] + fr[2] * ws[2] + ws[C]
    idx = int(np.argmax(score))
    yc0, xc0 = divmod(idx, W)
    feats = fr[:, yc0, xc0]
    d = [f32(wb[C * 4 + k]
             + ((feats[0] * wb[0 * 4 + k] + feats[1] * wb[1 * 4 + k])
                + feats[2] * wb[2 * 4 + k]))
         for k in range(4)]

    def sigmoid(x):
        return f32(1.0) / (f32(1.0) + np.exp(-x, dtype=f32))

    xc = f32(xc0) + np.tanh(d[2]) * f32(2.0)
    yc = f32(yc0) + np.tanh(d[3]) * f32(2.0)
    half_w = f32(2.0) + sigmoid(d[0]) * f32(W / 6.0)
    half_h = f32(2.0) + sigmoid(d[1]) * f32(H / 6.0)
    x0 = np.clip(xc - half_w, f32(0), f32(W - 1))
    x1 = np.clip(xc + half_w, f32(0), f32(W - 1))
    y0 = np.clip(yc - half_h, f32(0), f32(H - 1))
    y1 = np.clip(yc + half_h, f32(0), f32(H - 1))

    w = x1 - x0
    h = y1 - y0
    w_m = (w / f32(4.0)) * f32(0.5)
    h_m = (h / f32(4.0)) * f32(0.5)
    y0n = max(0, int(y0 - h_m))
    y1n = min(H, int(y1 + h_m) + 1)
    x0n = max(0, int(x0 - w_m))
    x1n = min(W, int(x1 + w_m) + 1)
    crop = fr[:, y0n:y1n, x0n:x1n]
    hc, wc = crop.shape[1], crop.shape[2]

    sy = np.clip((np.arange(OH, dtype=f32) + f32(0.5)) * (f32(hc) / f32(OH)) - f32(0.5),
                 f32(0), f32(hc - 1))
    sx = np.clip((np.arange(OW, dtype=f32) + f32(0.5)) * (f32(wc) / f32(OW)) - f32(0.5),
                 f32(0), f32(wc - 1))
    iy0 = np.floor(sy).astype(np.int32); fy = sy - iy0
    ix0 = np.floor(sx).astype(np.int32); fx = sx - ix0
    iy1 = np.minimum(iy0 + 1, hc - 1)
    ix1 = np.minimum(ix0 + 1, wc - 1)

    crop64 = crop.astype(np.float64)
    fy_ = fy.astype(np.float64)[None, :, None]
    fx_ = fx.astype(np.float64)[None, None, :]
    out = ((1 - fy_) * (1 - fx_) * crop64[:, iy0][:, :, ix0]
           + (1 - fy_) * fx_ * crop64[:, iy0][:, :, ix1]
           + fy_ * (1 - fx_) * crop64[:, iy1][:, :, ix0]
           + fy_ * fx_ * crop64[:, iy1][:, :, ix1])
    return np.transpose(out, (1, 2, 0))   # back to HWC


if __name__ == "__main__":
    B = 2
    key = jax.random.PRNGKey(0)
    frames = jax.random.uniform(key, (B, H, W, C), dtype=jnp.float32,
                                minval=0.0, maxval=255.0)
    # One strongly separated synthetic "face" peak per frame: keeps the
    # detector argmax unambiguous under the DEFAULT-precision (bf16) score
    # matmul, mirroring a real detection where the face response dominates.
    spots = [(9, 37), (21, 101)]
    for b, (sy_, sx_) in enumerate(spots):
        frames = frames.at[b, sy_, sx_, :].add(500.0)

    # deterministic synthetic detector parameters
    w_score = jnp.array([0.299, 0.587, 0.114, 0.0], dtype=jnp.float32)   # (C+1,)
    w_box = jnp.arange(C * 4 + 4, dtype=jnp.float32) * 0.013 - 0.07      # (C*4+4,)

    out = retina_get_face(frames, w_score, w_box)
    out = jax.block_until_ready(out)

    assert out.shape == (B, OH, OW, C), out.shape
    assert bool(jnp.all(jnp.isfinite(out)))

    frames_np = np.asarray(frames)
    out_np = np.asarray(out)
    for b in range(B):
        ref = ref_forward(frames_np[b], np.asarray(w_score), np.asarray(w_box))
        # DEFAULT-precision (single bf16 MXU pass) resize vs f64 reference:
        # worst-case error ~1.6% of the local pixel magnitude.
        np.testing.assert_allclose(out_np[b], ref, rtol=5e-2, atol=1.0)

    print("KERNEL_OK")
</pallas_src>

<mosaic_0001>
module attributes {stable_mosaic.version = 11 : i64} {
  func.func @retina_get_face_kernel(%arg0: i32, %arg1: memref<1x32x384xf32, #tpu.memory_space<vmem>>, %arg2: memref<384x128xf32, #tpu.memory_space<vmem>>, %arg3: memref<384x128xf32, #tpu.memory_space<vmem>>, %arg4: memref<384x128xf32, #tpu.memory_space<vmem>>, %arg5: memref<1x128xf32, #tpu.memory_space<vmem>>, %arg6: memref<32x128xf32, #tpu.memory_space<vmem>>, %arg7: memref<4xf32, #tpu.memory_space<smem>>, %arg8: memref<16xf32, #tpu.memory_space<smem>>, %arg9: memref<1x16x128xf32, #tpu.memory_space<vmem>>) attributes {dimension_semantics = [#tpu.dimension_semantics<parallel>], iteration_bounds = array<i64: 2>, scalar_prefetch = 0 : i64, scratch_operands = 0 : i64, tpu.core_type = #tpu.core_type<tc>, window_params = [{transform_indices = @transform_0, window_bounds = array<i64: 1, 32, 384>}, {pipeline_mode = #tpu.pipeline_mode<synchronous>, transform_indices = @transform_1, window_bounds = array<i64: 384, 128>}, {pipeline_mode = #tpu.pipeline_mode<synchronous>, transform_indices = @transform_2, window_bounds = array<i64: 384, 128>}, {pipeline_mode = #tpu.pipeline_mode<synchronous>, transform_indices = @transform_3, window_bounds = array<i64: 384, 128>}, {pipeline_mode = #tpu.pipeline_mode<synchronous>, transform_indices = @transform_4, window_bounds = array<i64: 1, 128>}, {pipeline_mode = #tpu.pipeline_mode<synchronous>, transform_indices = @transform_5, window_bounds = array<i64: 32, 128>}, {transform_indices = @transform_6, window_bounds = array<i64: 4>}, {transform_indices = @transform_7, window_bounds = array<i64: 16>}, {transform_indices = @transform_8, window_bounds = array<i64: 1, 16, 128>}]} {
    %c0 = arith.constant 0 : index
    %c0_0 = arith.constant 0 : index
    %c0_1 = arith.constant 0 : index
    %0 = vector.load %arg1[%c0, %c0_0, %c0_1] : memref<1x32x384xf32, #tpu.memory_space<vmem>>, vector<1x32x384xf32>
    %1 = vector.shape_cast %0 : vector<1x32x384xf32> to vector<32x384xf32>
    %c0_2 = arith.constant 0 : index
    %c0_3 = arith.constant 0 : index
    %2 = vector.load %arg2[%c0_2, %c0_3] : memref<384x128xf32, #tpu.memory_space<vmem>>, vector<384x128xf32>
    %cst = arith.constant dense<0.000000e+00> : vector<32x128xf32>
    %3 = tpu.matmul %1, %2, %cst {dimension_numbers = #tpu.dot_dimension_numbers<[1], [0], [0], [1], [0, 0, 1, 1], [], []>} : vector<32x384xf32>, vector<384x128xf32>, vector<32x128xf32> -> vector<32x128xf32>
    %c3 = arith.constant 3 : index
    %4 = memref.load %arg7[%c3] : memref<4xf32, #tpu.memory_space<smem>>
    %5 = vector.broadcast %4 : f32 to vector<32x128xf32>
    %6 = arith.addf %3, %5 : vector<32x128xf32>
    %7 = vector.shape_cast %6 : vector<32x128xf32> to vector<1x32x128xf32>
    %cst_4 = arith.constant dense<0xFF800000> : vector<1xf32>
    %8 = vector.multi_reduction <maximumf>, %7, %cst_4 [1, 2] : vector<1x32x128xf32> to vector<1xf32>
    %9 = vector.shape_cast %8 : vector<1xf32> to vector<1x1x1xf32>
    %10 = vector.extract %9[0, 0, 0] : f32 from vector<1x1x1xf32>
    %11 = vector.broadcast %10 : f32 to vector<32x128xf32>
    %12 = arith.cmpf oge, %6, %11 : vector<32x128xf32>
    %c0_5 = arith.constant 0 : index
    %c0_6 = arith.constant 0 : index
    %13 = vector.load %arg6[%c0_5, %c0_6] : memref<32x128xf32, #tpu.memory_space<vmem>>, vector<32x128xf32>
    %cst_7 = arith.constant 4.096000e+03 : f32
    %14 = vector.broadcast %cst_7 : f32 to vector<32x128xf32>
    %15 = arith.select %12, %13, %14 : vector<32x128xi1>, vector<32x128xf32>
    %16 = vector.shape_cast %15 : vector<32x128xf32> to vector<1x32x128xf32>
    %cst_8 = arith.constant dense<0x7F800000> : vector<1xf32>
    %17 = vector.multi_reduction <minimumf>, %16, %cst_8 [1, 2] : vector<1x32x128xf32> to vector<1xf32>
    %18 = vector.shape_cast %17 : vector<1xf32> to vector<1x1x1xf32>
    %19 = vector.extract %18[0, 0, 0] : f32 from vector<1x1x1xf32>
    %cst_9 = arith.constant 1.280000e+02 : f32
    %20 = arith.divf %19, %cst_9 : f32
    %21 = math.floor %20 : f32
    %cst_10 = arith.constant 1.280000e+02 : f32
    %22 = arith.mulf %21, %cst_10 : f32
    %23 = arith.subf %19, %22 : f32
    %24 = arith.fptosi %21 : f32 to i32
    %25 = tpu.iota {dimensions = array<i32: 0>} : vector<32x1xi32>
    %26 = vector.broadcast %24 : i32 to vector<32x1xi32>
    %27 = arith.cmpi eq, %25, %26 : vector<32x1xi32>
    %28 = arith.extui %27 : vector<32x1xi1> to vector<32x1xi32>
    %29 = arith.sitofp %28 : vector<32x1xi32> to vector<32x1xf32>
    %30 = vector.broadcast %29 : vector<32x1xf32> to vector<32x384xf32>
    %31 = arith.mulf %1, %30 : vector<32x384xf32>
    %cst_11 = arith.constant dense<0.000000e+00> : vector<384xf32>
    %32 = vector.multi_reduction <add>, %31, %cst_11 [0] : vector<32x384xf32> to vector<384xf32>
    %33 = vector.shape_cast %32 : vector<384xf32> to vector<1x384xf32>
    %34 = tpu.iota {dimensions = array<i32: 1>} : vector<1x384xi32>
    %cst_12 = arith.constant 3.000000e+00 : f32
    %35 = arith.mulf %23, %cst_12 : f32
    %36 = arith.fptosi %35 : f32 to i32
    %c0_i32 = arith.constant 0 : i32
    %37 = arith.addi %36, %c0_i32 : i32
    %38 = vector.broadcast %37 : i32 to vector<1x384xi32>
    %39 = arith.cmpi eq, %34, %38 : vector<1x384xi32>
    %40 = arith.extui %39 : vector<1x384xi1> to vector<1x384xi32>
    %41 = arith.sitofp %40 : vector<1x384xi32> to vector<1x384xf32>
    %42 = arith.mulf %33, %41 : vector<1x384xf32>
    %43 = vector.shape_cast %42 : vector<1x384xf32> to vector<1x1x384xf32>
    %cst_13 = arith.constant dense<0.000000e+00> : vector<1xf32>
    %44 = vector.multi_reduction <add>, %43, %cst_13 [1, 2] : vector<1x1x384xf32> to vector<1xf32>
    %45 = vector.shape_cast %44 : vector<1xf32> to vector<1x1x1xf32>
    %46 = vector.extract %45[0, 0, 0] : f32 from vector<1x1x1xf32>
    %c1_i32 = arith.constant 1 : i32
    %47 = arith.addi %36, %c1_i32 : i32
    %48 = vector.broadcast %47 : i32 to vector<1x384xi32>
    %49 = arith.cmpi eq, %34, %48 : vector<1x384xi32>
    %50 = arith.extui %49 : vector<1x384xi1> to vector<1x384xi32>
    %51 = arith.sitofp %50 : vector<1x384xi32> to vector<1x384xf32>
    %52 = arith.mulf %33, %51 : vector<1x384xf32>
    %53 = vector.shape_cast %52 : vector<1x384xf32> to vector<1x1x384xf32>
    %cst_14 = arith.constant dense<0.000000e+00> : vector<1xf32>
    %54 = vector.multi_reduction <add>, %53, %cst_14 [1, 2] : vector<1x1x384xf32> to vector<1xf32>
    %55 = vector.shape_cast %54 : vector<1xf32> to vector<1x1x1xf32>
    %56 = vector.extract %55[0, 0, 0] : f32 from vector<1x1x1xf32>
    %c2_i32 = arith.constant 2 : i32
    %57 = arith.addi %36, %c2_i32 : i32
    %58 = vector.broadcast %57 : i32 to vector<1x384xi32>
    %59 = arith.cmpi eq, %34, %58 : vector<1x384xi32>
    %60 = arith.extui %59 : vector<1x384xi1> to vector<1x384xi32>
    %61 = arith.sitofp %60 : vector<1x384xi32> to vector<1x384xf32>
    %62 = arith.mulf %33, %61 : vector<1x384xf32>
    %63 = vector.shape_cast %62 : vector<1x384xf32> to vector<1x1x384xf32>
    %cst_15 = arith.constant dense<0.000000e+00> : vector<1xf32>
    %64 = vector.multi_reduction <add>, %63, %cst_15 [1, 2] : vector<1x1x384xf32> to vector<1xf32>
    %65 = vector.shape_cast %64 : vector<1xf32> to vector<1x1x1xf32>
    %66 = vector.extract %65[0, 0, 0] : f32 from vector<1x1x1xf32>
    %c0_16 = arith.constant 0 : index
    %67 = memref.load %arg8[%c0_16] : memref<16xf32, #tpu.memory_space<smem>>
    %68 = arith.mulf %46, %67 : f32
    %c4 = arith.constant 4 : index
    %69 = memref.load %arg8[%c4] : memref<16xf32, #tpu.memory_space<smem>>
    %70 = arith.mulf %56, %69 : f32
    %71 = arith.addf %68, %70 : f32
    %c8 = arith.constant 8 : index
    %72 = memref.load %arg8[%c8] : memref<16xf32, #tpu.memory_space<smem>>
    %73 = arith.mulf %66, %72 : f32
    %74 = arith.addf %71, %73 : f32
    %c12 = arith.constant 12 : index
    %75 = memref.load %arg8[%c12] : memref<16xf32, #tpu.memory_space<smem>>
    %76 = arith.addf %75, %74 : f32
    %c1 = arith.constant 1 : index
    %77 = memref.load %arg8[%c1] : memref<16xf32, #tpu.memory_space<smem>>
    %78 = arith.mulf %46, %77 : f32
    %c5 = arith.constant 5 : index
    %79 = memref.load %arg8[%c5] : memref<16xf32, #tpu.memory_space<smem>>
    %80 = arith.mulf %56, %79 : f32
    %81 = arith.addf %78, %80 : f32
    %c9 = arith.constant 9 : index
    %82 = memref.load %arg8[%c9] : memref<16xf32, #tpu.memory_space<smem>>
    %83 = arith.mulf %66, %82 : f32
    %84 = arith.addf %81, %83 : f32
    %c13 = arith.constant 13 : index
    %85 = memref.load %arg8[%c13] : memref<16xf32, #tpu.memory_space<smem>>
    %86 = arith.addf %85, %84 : f32
    %c2 = arith.constant 2 : index
    %87 = memref.load %arg8[%c2] : memref<16xf32, #tpu.memory_space<smem>>
    %88 = arith.mulf %46, %87 : f32
    %c6 = arith.constant 6 : index
    %89 = memref.load %arg8[%c6] : memref<16xf32, #tpu.memory_space<smem>>
    %90 = arith.mulf %56, %89 : f32
    %91 = arith.addf %88, %90 : f32
    %c10 = arith.constant 10 : index
    %92 = memref.load %arg8[%c10] : memref<16xf32, #tpu.memory_space<smem>>
    %93 = arith.mulf %66, %92 : f32
    %94 = arith.addf %91, %93 : f32
    %c14 = arith.constant 14 : index
    %95 = memref.load %arg8[%c14] : memref<16xf32, #tpu.memory_space<smem>>
    %96 = arith.addf %95, %94 : f32
    %c3_17 = arith.constant 3 : index
    %97 = memref.load %arg8[%c3_17] : memref<16xf32, #tpu.memory_space<smem>>
    %98 = arith.mulf %46, %97 : f32
    %c7 = arith.constant 7 : index
    %99 = memref.load %arg8[%c7] : memref<16xf32, #tpu.memory_space<smem>>
    %100 = arith.mulf %56, %99 : f32
    %101 = arith.addf %98, %100 : f32
    %c11 = arith.constant 11 : index
    %102 = memref.load %arg8[%c11] : memref<16xf32, #tpu.memory_space<smem>>
    %103 = arith.mulf %66, %102 : f32
    %104 = arith.addf %101, %103 : f32
    %c15 = arith.constant 15 : index
    %105 = memref.load %arg8[%c15] : memref<16xf32, #tpu.memory_space<smem>>
    %106 = arith.addf %105, %104 : f32
    %107 = math.tanh %96 : f32
    %cst_18 = arith.constant 2.000000e+00 : f32
    %108 = arith.mulf %107, %cst_18 : f32
    %109 = arith.addf %23, %108 : f32
    %110 = math.tanh %106 : f32
    %cst_19 = arith.constant 2.000000e+00 : f32
    %111 = arith.mulf %110, %cst_19 : f32
    %112 = arith.addf %21, %111 : f32
    %113 = arith.negf %76 : f32
    %114 = math.exp %113 : f32
    %cst_20 = arith.constant 1.000000e+00 : f32
    %115 = arith.addf %cst_20, %114 : f32
    %116 = arith.divf %cst_20, %115 : f32
    %cst_21 = arith.constant 21.333334 : f32
    %117 = arith.mulf %116, %cst_21 : f32
    %cst_22 = arith.constant 2.000000e+00 : f32
    %118 = arith.addf %cst_22, %117 : f32
    %119 = arith.negf %86 : f32
    %120 = math.exp %119 : f32
    %cst_23 = arith.constant 1.000000e+00 : f32
    %121 = arith.addf %cst_23, %120 : f32
    %122 = arith.divf %cst_23, %121 : f32
    %cst_24 = arith.constant 5.33333349 : f32
    %123 = arith.mulf %122, %cst_24 : f32
    %cst_25 = arith.constant 2.000000e+00 : f32
    %124 = arith.addf %cst_25, %123 : f32
    %125 = arith.subf %109, %118 : f32
    %cst_26 = arith.constant 0.000000e+00 : f32
    %cst_27 = arith.constant 1.270000e+02 : f32
    %126 = arith.maximumf %cst_26, %125 : f32
    %127 = arith.minimumf %cst_27, %126 : f32
    %128 = arith.addf %109, %118 : f32
    %cst_28 = arith.constant 0.000000e+00 : f32
    %cst_29 = arith.constant 1.270000e+02 : f32
    %129 = arith.maximumf %cst_28, %128 : f32
    %130 = arith.minimumf %cst_29, %129 : f32
    %131 = arith.subf %112, %124 : f32
    %cst_30 = arith.constant 0.000000e+00 : f32
    %cst_31 = arith.constant 3.100000e+01 : f32
    %132 = arith.maximumf %cst_30, %131 : f32
    %133 = arith.minimumf %cst_31, %132 : f32
    %134 = arith.addf %112, %124 : f32
    %cst_32 = arith.constant 0.000000e+00 : f32
    %cst_33 = arith.constant 3.100000e+01 : f32
    %135 = arith.maximumf %cst_32, %134 : f32
    %136 = arith.minimumf %cst_33, %135 : f32
    %137 = arith.subf %130, %127 : f32
    %138 = arith.subf %136, %133 : f32
    %cst_34 = arith.constant 4.000000e+00 : f32
    %139 = arith.divf %137, %cst_34 : f32
    %cst_35 = arith.constant 5.000000e-01 : f32
    %140 = arith.mulf %139, %cst_35 : f32
    %cst_36 = arith.constant 4.000000e+00 : f32
    %141 = arith.divf %138, %cst_36 : f32
    %cst_37 = arith.constant 5.000000e-01 : f32
    %142 = arith.mulf %141, %cst_37 : f32
    %143 = arith.subf %133, %142 : f32
    %144 = math.floor %143 : f32
    %145 = arith.fptosi %144 : f32 to i32
    %c0_i32_38 = arith.constant 0 : i32
    %146 = arith.maxsi %c0_i32_38, %145 : i32
    %147 = arith.addf %136, %142 : f32
    %148 = math.floor %147 : f32
    %149 = arith.fptosi %148 : f32 to i32
    %c1_i32_39 = arith.constant 1 : i32
    %150 = arith.addi %149, %c1_i32_39 : i32
    %c32_i32 = arith.constant 32 : i32
    %151 = arith.minsi %c32_i32, %150 : i32
    %152 = arith.subf %127, %140 : f32
    %153 = math.floor %152 : f32
    %154 = arith.fptosi %153 : f32 to i32
    %c0_i32_40 = arith.constant 0 : i32
    %155 = arith.maxsi %c0_i32_40, %154 : i32
    %156 = arith.addf %130, %140 : f32
    %157 = math.floor %156 : f32
    %158 = arith.fptosi %157 : f32 to i32
    %c1_i32_41 = arith.constant 1 : i32
    %159 = arith.addi %158, %c1_i32_41 : i32
    %c128_i32 = arith.constant 128 : i32
    %160 = arith.minsi %c128_i32, %159 : i32
    %161 = arith.subi %151, %146 : i32
    %162 = arith.sitofp %161 : i32 to f32
    %163 = arith.subi %160, %155 : i32
    %164 = arith.sitofp %163 : i32 to f32
    %165 = arith.sitofp %146 : i32 to f32
    %166 = arith.sitofp %155 : i32 to f32
    %167 = tpu.iota {dimensions = array<i32: 0>} : vector<16x1xi32>
    %168 = arith.sitofp %167 : vector<16x1xi32> to vector<16x1xf32>
    %169 = tpu.iota {dimensions = array<i32: 1>} : vector<1x32xi32>
    %170 = arith.sitofp %169 : vector<1x32xi32> to vector<1x32xf32>
    %cst_42 = arith.constant 5.000000e-01 : f32
    %171 = vector.broadcast %cst_42 : f32 to vector<16x1xf32>
    %172 = arith.addf %168, %171 : vector<16x1xf32>
    %cst_43 = arith.constant 1.600000e+01 : f32
    %173 = arith.divf %162, %cst_43 : f32
    %174 = vector.broadcast %173 : f32 to vector<16x1xf32>
    %175 = arith.mulf %172, %174 : vector<16x1xf32>
    %cst_44 = arith.constant 5.000000e-01 : f32
    %176 = vector.broadcast %cst_44 : f32 to vector<16x1xf32>
    %177 = arith.subf %175, %176 : vector<16x1xf32>
    %cst_45 = arith.constant 1.000000e+00 : f32
    %178 = arith.subf %162, %cst_45 : f32
    %cst_46 = arith.constant 0.000000e+00 : f32
    %179 = vector.broadcast %cst_46 : f32 to vector<16x1xf32>
    %180 = arith.maximumf %179, %177 : vector<16x1xf32>
    %181 = vector.broadcast %178 : f32 to vector<16x1xf32>
    %182 = arith.minimumf %181, %180 : vector<16x1xf32>
    %183 = math.floor %182 : vector<16x1xf32>
    %184 = arith.subf %182, %183 : vector<16x1xf32>
    %cst_47 = arith.constant 1.000000e+00 : f32
    %185 = vector.broadcast %cst_47 : f32 to vector<16x1xf32>
    %186 = arith.addf %183, %185 : vector<16x1xf32>
    %cst_48 = arith.constant 1.000000e+00 : f32
    %187 = arith.subf %162, %cst_48 : f32
    %188 = vector.broadcast %187 : f32 to vector<16x1xf32>
    %189 = arith.minimumf %186, %188 : vector<16x1xf32>
    %190 = vector.broadcast %165 : f32 to vector<16x1xf32>
    %191 = arith.addf %190, %183 : vector<16x1xf32>
    %192 = vector.broadcast %170 : vector<1x32xf32> to vector<16x32xf32>
    %193 = vector.broadcast %191 : vector<16x1xf32> to vector<16x32xf32>
    %194 = arith.cmpf oeq, %192, %193 : vector<16x32xf32>
    %195 = arith.extui %194 : vector<16x32xi1> to vector<16x32xi32>
    %196 = arith.sitofp %195 : vector<16x32xi32> to vector<16x32xf32>
    %cst_49 = arith.constant 1.000000e+00 : f32
    %197 = vector.broadcast %cst_49 : f32 to vector<16x1xf32>
    %198 = arith.subf %197, %184 : vector<16x1xf32>
    %199 = vector.broadcast %198 : vector<16x1xf32> to vector<16x32xf32>
    %200 = arith.mulf %196, %199 : vector<16x32xf32>
    %201 = vector.broadcast %165 : f32 to vector<16x1xf32>
    %202 = arith.addf %201, %189 : vector<16x1xf32>
    %203 = vector.broadcast %170 : vector<1x32xf32> to vector<16x32xf32>
    %204 = vector.broadcast %202 : vector<16x1xf32> to vector<16x32xf32>
    %205 = arith.cmpf oeq, %203, %204 : vector<16x32xf32>
    %206 = arith.extui %205 : vector<16x32xi1> to vector<16x32xi32>
    %207 = arith.sitofp %206 : vector<16x32xi32> to vector<16x32xf32>
    %208 = vector.broadcast %184 : vector<16x1xf32> to vector<16x32xf32>
    %209 = arith.mulf %207, %208 : vector<16x32xf32>
    %210 = arith.addf %200, %209 : vector<16x32xf32>
    %c0_50 = arith.constant 0 : index
    %c0_51 = arith.constant 0 : index
    %211 = vector.load %arg5[%c0_50, %c0_51] : memref<1x128xf32, #tpu.memory_space<vmem>>, vector<1x128xf32>
    %cst_52 = arith.constant 5.000000e-01 : f32
    %212 = vector.broadcast %cst_52 : f32 to vector<1x128xf32>
    %213 = arith.addf %211, %212 : vector<1x128xf32>
    %cst_53 = arith.constant 1.600000e+01 : f32
    %214 = arith.divf %164, %cst_53 : f32
    %215 = vector.broadcast %214 : f32 to vector<1x128xf32>
    %216 = arith.mulf %213, %215 : vector<1x128xf32>
    %cst_54 = arith.constant 5.000000e-01 : f32
    %217 = vector.broadcast %cst_54 : f32 to vector<1x128xf32>
    %218 = arith.subf %216, %217 : vector<1x128xf32>
    %cst_55 = arith.constant 1.000000e+00 : f32
    %219 = arith.subf %164, %cst_55 : f32
    %cst_56 = arith.constant 0.000000e+00 : f32
    %220 = vector.broadcast %cst_56 : f32 to vector<1x128xf32>
    %221 = arith.maximumf %220, %218 : vector<1x128xf32>
    %222 = vector.broadcast %219 : f32 to vector<1x128xf32>
    %223 = arith.minimumf %222, %221 : vector<1x128xf32>
    %224 = math.floor %223 : vector<1x128xf32>
    %225 = arith.subf %223, %224 : vector<1x128xf32>
    %cst_57 = arith.constant 1.000000e+00 : f32
    %226 = vector.broadcast %cst_57 : f32 to vector<1x128xf32>
    %227 = arith.addf %224, %226 : vector<1x128xf32>
    %cst_58 = arith.constant 1.000000e+00 : f32
    %228 = arith.subf %164, %cst_58 : f32
    %229 = vector.broadcast %228 : f32 to vector<1x128xf32>
    %230 = arith.minimumf %227, %229 : vector<1x128xf32>
    %c0_59 = arith.constant 0 : index
    %c0_60 = arith.constant 0 : index
    %231 = vector.load %arg3[%c0_59, %c0_60] : memref<384x128xf32, #tpu.memory_space<vmem>>, vector<384x128xf32>
    %232 = vector.broadcast %166 : f32 to vector<1x128xf32>
    %233 = arith.addf %232, %224 : vector<1x128xf32>
    %234 = vector.broadcast %233 : vector<1x128xf32> to vector<384x128xf32>
    %235 = arith.cmpf oeq, %231, %234 : vector<384x128xf32>
    %236 = arith.extui %235 : vector<384x128xi1> to vector<384x128xi32>
    %237 = arith.sitofp %236 : vector<384x128xi32> to vector<384x128xf32>
    %cst_61 = arith.constant 1.000000e+00 : f32
    %238 = vector.broadcast %cst_61 : f32 to vector<1x128xf32>
    %239 = arith.subf %238, %225 : vector<1x128xf32>
    %240 = vector.broadcast %239 : vector<1x128xf32> to vector<384x128xf32>
    %241 = arith.mulf %237, %240 : vector<384x128xf32>
    %242 = vector.broadcast %166 : f32 to vector<1x128xf32>
    %243 = arith.addf %242, %230 : vector<1x128xf32>
    %244 = vector.broadcast %243 : vector<1x128xf32> to vector<384x128xf32>
    %245 = arith.cmpf oeq, %231, %244 : vector<384x128xf32>
    %246 = arith.extui %245 : vector<384x128xi1> to vector<384x128xi32>
    %247 = arith.sitofp %246 : vector<384x128xi32> to vector<384x128xf32>
    %248 = vector.broadcast %225 : vector<1x128xf32> to vector<384x128xf32>
    %249 = arith.mulf %247, %248 : vector<384x128xf32>
    %250 = arith.addf %241, %249 : vector<384x128xf32>
    %c0_62 = arith.constant 0 : index
    %c0_63 = arith.constant 0 : index
    %251 = vector.load %arg4[%c0_62, %c0_63] : memref<384x128xf32, #tpu.memory_space<vmem>>, vector<384x128xf32>
    %252 = arith.mulf %250, %251 : vector<384x128xf32>
    %cst_64 = arith.constant dense<0.000000e+00> : vector<16x384xf32>
    %253 = tpu.matmul %210, %1, %cst_64 {dimension_numbers = #tpu.dot_dimension_numbers<[1], [0], [0], [1], [0, 0, 1, 1], [], []>} : vector<16x32xf32>, vector<32x384xf32>, vector<16x384xf32> -> vector<16x384xf32>
    %cst_65 = arith.constant dense<0.000000e+00> : vector<16x128xf32>
    %254 = tpu.matmul %253, %252, %cst_65 {dimension_numbers = #tpu.dot_dimension_numbers<[1], [0], [0], [1], [0, 0, 1, 1], [], []>} : vector<16x384xf32>, vector<384x128xf32>, vector<16x128xf32> -> vector<16x128xf32>
    %c0_66 = arith.constant 0 : index
    %c0_67 = arith.constant 0 : index
    %c0_68 = arith.constant 0 : index
    %255 = vector.load %arg9[%c0_66, %c0_67, %c0_68] : memref<1x16x128xf32, #tpu.memory_space<vmem>>, vector<1x16x128xf32>
    %256 = vector.shape_cast %255 : vector<1x16x128xf32> to vector<16x128xf32>
    %257 = vector.shape_cast %254 : vector<16x128xf32> to vector<1x16x128xf32>
    tpu.vector_store %arg9[%c0_66, %c0_67, %c0_68], %257 {strides = array<i32>} : memref<1x16x128xf32, #tpu.memory_space<vmem>>, vector<1x16x128xf32>,
    return
  }
  func.func @transform_0(%arg0: i32) -> (i32, i32, i32) {
    %c0_i32 = arith.constant 0 : i32
    %c0_i32_0 = arith.constant 0 : i32
    %c0_i32_1 = arith.constant 0 : i32
    return %arg0, %c0_i32, %c0_i32_0 : i32, i32, i32
  }
  func.func @transform_1(%arg0: i32) -> (i32, i32) {
    %c0_i32 = arith.constant 0 : i32
    %c0_i32_0 = arith.constant 0 : i32
    %c0_i32_1 = arith.constant 0 : i32
    return %c0_i32, %c0_i32_0 : i32, i32
  }
  func.func @transform_2(%arg0: i32) -> (i32, i32) {
    %c0_i32 = arith.constant 0 : i32
    %c0_i32_0 = arith.constant 0 : i32
    %c0_i32_1 = arith.constant 0 : i32
    return %c0_i32, %c0_i32_0 : i32, i32
  }
  func.func @transform_3(%arg0: i32) -> (i32, i32) {
    %c0_i32 = arith.constant 0 : i32
    %c0_i32_0 = arith.constant 0 : i32
    %c0_i32_1 = arith.constant 0 : i32
    return %c0_i32, %c0_i32_0 : i32, i32
  }
  func.func @transform_4(%arg0: i32) -> (i32, i32) {
    %c0_i32 = arith.constant 0 : i32
    %c0_i32_0 = arith.constant 0 : i32
    %c0_i32_1 = arith.constant 0 : i32
    return %c0_i32, %c0_i32_0 : i32, i32
  }
  func.func @transform_5(%arg0: i32) -> (i32, i32) {
    %c0_i32 = arith.constant 0 : i32
    %c0_i32_0 = arith.constant 0 : i32
    %c0_i32_1 = arith.constant 0 : i32
    return %c0_i32, %c0_i32_0 : i32, i32
  }
  func.func @transform_6(%arg0: i32) -> i32 {
    %c0_i32 = arith.constant 0 : i32
    %c0_i32_0 = arith.constant 0 : i32
    return %c0_i32 : i32
  }
  func.func @transform_7(%arg0: i32) -> i32 {
    %c0_i32 = arith.constant 0 : i32
    %c0_i32_0 = arith.constant 0 : i32
    return %c0_i32 : i32
  }
  func.func @transform_8(%arg0: i32) -> (i32, i32, i32) {
    %c0_i32 = arith.constant 0 : i32
    %c0_i32_0 = arith.constant 0 : i32
    %c0_i32_1 = arith.constant 0 : i32
    return %arg0, %c0_i32, %c0_i32_0 : i32, i32, i32
  }
}

</mosaic_0001>

<llo_original>
// kernel: retina_get_face.1
$region0: #{retina_get_face.1}
  #allocation0 [shape = 'u32[]', space=smem, size = 0x4, offset = 0x4, fixed_abs, tag = 'smem constant byte address 0x4 - core index']
  #allocation1 [shape = 'u32[144,128]{1,0:T(1,128)}', space=vmem, size = 0x12000, scoped, tag = 'internal scratch']
  %s0 = inlined_call_operand.vmem [shape: f32[2,32,384], index: 0, kind: input, shape index: {}]
  %s1 = inlined_call_operand.vmem [shape: f32[384,128], index: 1, kind: input, shape index: {}]
  %s2 = inlined_call_operand.vmem [shape: f32[384,128], index: 2, kind: input, shape index: {}]
  %s3 = inlined_call_operand.vmem [shape: f32[384,128], index: 3, kind: input, shape index: {}]
  %s4 = inlined_call_operand.vmem [shape: f32[1,128], index: 4, kind: input, shape index: {}]
  %s5 = inlined_call_operand.vmem [shape: f32[32,128], index: 5, kind: input, shape index: {}]
  %s6 = inlined_call_operand.vmem [shape: f32[4], index: 6, kind: input, shape index: {}]
  %s7 = inlined_call_operand.vmem [shape: f32[16], index: 7, kind: input, shape index: {}]
  %s8 = inlined_call_operand.vmem [shape: f32[2,16,128], index: 8, kind: output, shape index: {}]
  %s9 = sld [smem:[#allocation0]]
  $region73: #{retina_get_face.1} parent=0
    _
  %s11 = ssub.s32 1, %s9
  %s12 = scalar_select 0, %s11, %s9
  $region1: #{retina_get_face.1} parent=0
    #allocation2 [shape = 'u8[512]{0}', space=smem, size = 0x200, scoped, tag = 'input window, operand 6, single buffered']
    #allocation3 [shape = 's32[2]{0}', space=sflag, size = 0x8, scoped, tag = 'scoped memory for retina_get_face.1']
    #allocation4 [shape = 'u8[512]{0}', space=smem, size = 0x200, scoped, tag = 'input window, operand 7, single buffered']
    #allocation5 [shape = 's32[1]{0}', space=sflag, size = 0x4, scoped, tag = 'scoped memory for retina_get_face.1']
    %13 = vsyncpa [#allocation3], 0
    %14 = vsyncpa [#allocation5], 0
    loop: start=0, step=1, limit=4
    $region2: #{retina_get_face.1} parent=1 // loop_pre_header
      _
    $region3: #{retina_get_face.1} parent=1 // loop_header
      %s16 = sphi 0, %s20
      %p17 = scmp.ge.s32.totalorder %s16, 4
      %s26 = sphi 0, %s28
      %s29 = sphi 0, %s26
      %s30 = sphi 0, %s29
      %s46 = sphi 0, %s30
      %s50 = sphi 0, %s50
      %s52 = sphi 0, %s50
      %s53 = sphi 0, %s52
      %s67 = sphi 0, %s53
      %s71 = sphi 0, %s71
      %s73 = sphi 0, %s71
      %s74 = sphi 0, %s73
      %s88 = sphi 0, %s74
      %s92 = sphi 0, %s92
      %s94 = sphi 0, %s92
      %s95 = sphi 0, %s94
      %s109 = sphi 0, %s95
      %s113 = sphi 0, %s113
      %s115 = sphi 0, %s113
      %s116 = sphi 0, %s115
      %s130 = sphi 0, %s116
      %s134 = sphi 0, %s134
      %s136 = sphi 0, %s134
      %s137 = sphi 0, %s136
      %s151 = sphi 0, %s137
      %s155 = sphi 0, %s155
      %s157 = sphi 0, %s155
      %s158 = sphi 0, %s157
      %s172 = sphi 0, %s158
      %s176 = sphi 0, %s176
      %s178 = sphi 0, %s176
      %s179 = sphi 0, %s178
      %s193 = sphi 0, %s179
      %s199 = sphi 0, %s201
      %s202 = sphi 0, %s199
      %s203 = sphi 0, %s202
      %s219 = sphi 0, %s203
    $region4: #{retina_get_face.1} parent=1 // loop_header_branch
      %19 = sbr.rel (%p17) target = $region8
    $region5: #{retina_get_face.1} parent=1 // loop_body
      %s21 = ssub.s32 %s16, 1
      %s22 = ssub.s32 %s16, 2
      %s23 = sadd.s32 %s16, 1
      %s24 = ssub.s32 %s16, %s23
      %p25 = scmp.eq.s32.totalorder %s24, 0
      %s27 = sadd.s32 %s26, 1
      %s28 = scalar_select %p25, %s26, %s27
      %p31 = pneg %p25
      %p32 = scmp.eq.s32.totalorder %s16, 1
      %p33 = por %p31, %p32
      %p34 = scmp.ne.s32.totalorder %s26, %s29
      %p35 = scmp.eq.s32.totalorder %s16, 0
      %p36 = por %p34, %p35
      %p37 = scmp.ne.s32.totalorder %s26, %s29
      %p38 = scmp.eq.s32.totalorder %s21, 1
      %p39 = por %p37, %p38
      %p40 = scmp.ne.s32.totalorder %s29, %s30
      %p41 = scmp.eq.s32.totalorder %s21, 0
      %p42 = por %p40, %p41
      %p43 = scmp.ne.s32.totalorder %s29, %s30
      %p44 = scmp.eq.s32.totalorder %s22, 1
      %p45 = por %p43, %p44
      %p47 = scmp.ne.s32.totalorder %s30, %s46
      %p48 = scmp.eq.s32.totalorder %s22, 0
      %p49 = por %p47, %p48
      %s51 = sadd.s32 %s50, 1
      %p54 = scmp.eq.s32.totalorder %s16, 1
      %p55 = scmp.ne.s32.totalorder %s50, %s52
      %p56 = scmp.eq.s32.totalorder %s16, 0
      %p57 = por %p55, %p56
      %p58 = scmp.ne.s32.totalorder %s50, %s52
      %p59 = scmp.eq.s32.totalorder %s21, 1
      %p60 = por %p58, %p59
      %p61 = scmp.ne.s32.totalorder %s52, %s53
      %p62 = scmp.eq.s32.totalorder %s21, 0
      %p63 = por %p61, %p62
      %p64 = scmp.ne.s32.totalorder %s52, %s53
      %p65 = scmp.eq.s32.totalorder %s22, 1
      %p66 = por %p64, %p65
      %p68 = scmp.ne.s32.totalorder %s53, %s67
      %p69 = scmp.eq.s32.totalorder %s22, 0
      %p70 = por %p68, %p69
      %s72 = sadd.s32 %s71, 1
      %p75 = scmp.eq.s32.totalorder %s16, 1
      %p76 = scmp.ne.s32.totalorder %s71, %s73
      %p77 = scmp.eq.s32.totalorder %s16, 0
      %p78 = por %p76, %p77
      %p79 = scmp.ne.s32.totalorder %s71, %s73
      %p80 = scmp.eq.s32.totalorder %s21, 1
      %p81 = por %p79, %p80
      %p82 = scmp.ne.s32.totalorder %s73, %s74
      %p83 = scmp.eq.s32.totalorder %s21, 0
      %p84 = por %p82, %p83
      %p85 = scmp.ne.s32.totalorder %s73, %s74
      %p86 = scmp.eq.s32.totalorder %s22, 1
      %p87 = por %p85, %p86
      %p89 = scmp.ne.s32.totalorder %s74, %s88
      %p90 = scmp.eq.s32.totalorder %s22, 0
      %p91 = por %p89, %p90
      %s93 = sadd.s32 %s92, 1
      %p96 = scmp.eq.s32.totalorder %s16, 1
      %p97 = scmp.ne.s32.totalorder %s92, %s94
      %p98 = scmp.eq.s32.totalorder %s16, 0
      %p99 = por %p97, %p98
      %p100 = scmp.ne.s32.totalorder %s92, %s94
      %p101 = scmp.eq.s32.totalorder %s21, 1
      %p102 = por %p100, %p101
      %p103 = scmp.ne.s32.totalorder %s94, %s95
      %p104 = scmp.eq.s32.totalorder %s21, 0
      %p105 = por %p103, %p104
      %p106 = scmp.ne.s32.totalorder %s94, %s95
      %p107 = scmp.eq.s32.totalorder %s22, 1
      %p108 = por %p106, %p107
      %p110 = scmp.ne.s32.totalorder %s95, %s109
      %p111 = scmp.eq.s32.totalorder %s22, 0
      %p112 = por %p110, %p111
      %s114 = sadd.s32 %s113, 1
      %p117 = scmp.eq.s32.totalorder %s16, 1
      %p118 = scmp.ne.s32.totalorder %s113, %s115
      %p119 = scmp.eq.s32.totalorder %s16, 0
      %p120 = por %p118, %p119
      %p121 = scmp.ne.s32.totalorder %s113, %s115
      %p122 = scmp.eq.s32.totalorder %s21, 1
      %p123 = por %p121, %p122
      %p124 = scmp.ne.s32.totalorder %s115, %s116
      %p125 = scmp.eq.s32.totalorder %s21, 0
      %p126 = por %p124, %p125
      %p127 = scmp.ne.s32.totalorder %s115, %s116
      %p128 = scmp.eq.s32.totalorder %s22, 1
      %p129 = por %p127, %p128
      %p131 = scmp.ne.s32.totalorder %s116, %s130
      %p132 = scmp.eq.s32.totalorder %s22, 0
      %p133 = por %p131, %p132
      %s135 = sadd.s32 %s134, 1
      %p138 = scmp.eq.s32.totalorder %s16, 1
      %p139 = scmp.ne.s32.totalorder %s134, %s136
      %p140 = scmp.eq.s32.totalorder %s16, 0
      %p141 = por %p139, %p140
      %p142 = scmp.ne.s32.totalorder %s134, %s136
      %p143 = scmp.eq.s32.totalorder %s21, 1
      %p144 = por %p142, %p143
      %p145 = scmp.ne.s32.totalorder %s136, %s137
      %p146 = scmp.eq.s32.totalorder %s21, 0
      %p147 = por %p145, %p146
      %p148 = scmp.ne.s32.totalorder %s136, %s137
      %p149 = scmp.eq.s32.totalorder %s22, 1
      %p150 = por %p148, %p149
      %p152 = scmp.ne.s32.totalorder %s137, %s151
      %p153 = scmp.eq.s32.totalorder %s22, 0
      %p154 = por %p152, %p153
      %s156 = sadd.s32 %s155, 1
      %p159 = scmp.eq.s32.totalorder %s16, 1
      %p160 = scmp.ne.s32.totalorder %s155, %s157
      %p161 = scmp.eq.s32.totalorder %s16, 0
      %p162 = por %p160, %p161
      %p163 = scmp.ne.s32.totalorder %s155, %s157
      %p164 = scmp.eq.s32.totalorder %s21, 1
      %p165 = por %p163, %p164
      %p166 = scmp.ne.s32.totalorder %s157, %s158
      %p167 = scmp.eq.s32.totalorder %s21, 0
      %p168 = por %p166, %p167
      %p169 = scmp.ne.s32.totalorder %s157, %s158
      %p170 = scmp.eq.s32.totalorder %s22, 1
      %p171 = por %p169, %p170
      %p173 = scmp.ne.s32.totalorder %s158, %s172
      %p174 = scmp.eq.s32.totalorder %s22, 0
      %p175 = por %p173, %p174
      %s177 = sadd.s32 %s176, 1
      %p180 = scmp.eq.s32.totalorder %s16, 1
      %p181 = scmp.ne.s32.totalorder %s176, %s178
      %p182 = scmp.eq.s32.totalorder %s16, 0
      %p183 = por %p181, %p182
      %p184 = scmp.ne.s32.totalorder %s176, %s178
      %p185 = scmp.eq.s32.totalorder %s21, 1
      %p186 = por %p184, %p185
      %p187 = scmp.ne.s32.totalorder %s178, %s179
      %p188 = scmp.eq.s32.totalorder %s21, 0
      %p189 = por %p187, %p188
      %p190 = scmp.ne.s32.totalorder %s178, %s179
      %p191 = scmp.eq.s32.totalorder %s22, 1
      %p192 = por %p190, %p191
      %p194 = scmp.ne.s32.totalorder %s179, %s193
      %p195 = scmp.eq.s32.totalorder %s22, 0
      %p196 = por %p194, %p195
      %s197 = ssub.s32 %s16, %s23
      %p198 = scmp.eq.s32.totalorder %s197, 0
      %s200 = sadd.s32 %s199, 1
      %s201 = scalar_select %p198, %s199, %s200
      %p204 = pneg %p198
      %p205 = scmp.eq.s32.totalorder %s16, 1
      %p206 = por %p204, %p205
      %p207 = scmp.ne.s32.totalorder %s199, %s202
      %p208 = scmp.eq.s32.totalorder %s16, 0
      %p209 = por %p207, %p208
      %p210 = scmp.ne.s32.totalorder %s199, %s202
      %p211 = scmp.eq.s32.totalorder %s21, 1
      %p212 = por %p210, %p211
      %p213 = scmp.ne.s32.totalorder %s202, %s203
      %p214 = scmp.eq.s32.totalorder %s21, 0
      %p215 = por %p213, %p214
      %p216 = scmp.ne.s32.totalorder %s202, %s203
      %p217 = scmp.eq.s32.totalorder %s22, 1
      %p218 = por %p216, %p217
      %p220 = scmp.ne.s32.totalorder %s203, %s219
      %p221 = scmp.eq.s32.totalorder %s22, 0
      %p222 = por %p220, %p221
      %p223 = scmp.le.s32.totalorder 1, %s16
      %p224 = scmp.lt.s32.totalorder %s16, 3
      %p225 = pnand %p223, %p224
      %p226 = pneg %p225
      // Predicated region
      $region9: #{retina_get_face.1} parent=5 // pred_check
        _
      $region10: #{retina_get_face.1} parent=5 // pred_check_branch
        %228 = sbr.rel (%p225) target = $region12
      $region11: #{retina_get_face.1} parent=5 // pred_region
        %s229 = ssub.s32 %s16, 1
        // Predicated region
        $region13: #{retina_get_face.1} parent=11 // pred_check
          %p230 = pneg %p63
        $region14: #{retina_get_face.1} parent=11 // pred_check_branch
          %232 = sbr.rel (%p230) target = $region16
        $region15: #{retina_get_face.1} parent=11 // pred_region
          _
        $region16: #{retina_get_face.1} parent=11 // pred_fallthru
          _
        // Predicated region
        $region17: #{retina_get_face.1} parent=11 // pred_check
          %p233 = pneg %p84
        $region18: #{retina_get_face.1} parent=11 // pred_check_branch
          %235 = sbr.rel (%p233) target = $region20
        $region19: #{retina_get_face.1} parent=11 // pred_region
          _
        $region20: #{retina_get_face.1} parent=11 // pred_fallthru
          _
        // Predicated region
        $region21: #{retina_get_face.1} parent=11 // pred_check
          %p236 = pneg %p105
        $region22: #{retina_get_face.1} parent=11 // pred_check_branch
          %238 = sbr.rel (%p236) target = $region24
        $region23: #{retina_get_face.1} parent=11 // pred_region
          _
        $region24: #{retina_get_face.1} parent=11 // pred_fallthru
          _
        // Predicated region
        $region25: #{retina_get_face.1} parent=11 // pred_check
          %p239 = pneg %p126
        $region26: #{retina_get_face.1} parent=11 // pred_check_branch
          %241 = sbr.rel (%p239) target = $region28
        $region27: #{retina_get_face.1} parent=11 // pred_region
          _
        $region28: #{retina_get_face.1} parent=11 // pred_fallthru
          _
        // Predicated region
        $region29: #{retina_get_face.1} parent=11 // pred_check
          %p242 = pneg %p147
        $region30: #{retina_get_face.1} parent=11 // pred_check_branch
          %244 = sbr.rel (%p242) target = $region32
        $region31: #{retina_get_face.1} parent=11 // pred_region
          _
        $region32: #{retina_get_face.1} parent=11 // pred_fallthru
          _
        // Predicated region
        $region33: #{retina_get_face.1} parent=11 // pred_check
          %p245 = pneg %p168
        $region34: #{retina_get_face.1} parent=11 // pred_check_branch
          %247 = sbr.rel (%p245) target = $region36
        $region35: #{retina_get_face.1} parent=11 // pred_region
          %s249 = ssub.s32 16, 16
          %250 = vsyncadd [#allocation3], %s249
          %s252 = sshll.u32 %s6, 4
          %s253 = int_to_ptr.vmem [resolvable:$true] %s252
          %255 = dma.vmem_to_smem %s253, 16, [#allocation2], [#allocation3]
        $region36: #{retina_get_face.1} parent=11 // pred_fallthru
          _
        // Predicated region
        $region37: #{retina_get_face.1} parent=11 // pred_check
          %p256 = pneg %p189
        $region38: #{retina_get_face.1} parent=11 // pred_check_branch
          %258 = sbr.rel (%p256) target = $region40
        $region39: #{retina_get_face.1} parent=11 // pred_region
          %s260 = ssub.s32 16, 16
          %261 = vsyncadd [#allocation5], %s260
          %s263 = sshll.u32 %s7, 4
          %s264 = int_to_ptr.vmem [resolvable:$true] %s263
          %266 = dma.vmem_to_smem %s264, 16, [#allocation4], [#allocation5]
        $region40: #{retina_get_face.1} parent=11 // pred_fallthru
          _
      $region12: #{retina_get_face.1} parent=5 // pred_fallthru
        _
      %p267 = scmp.lt.s32.totalorder %s16, 2
      // Predicated region
      $region41: #{retina_get_face.1} parent=5 // pred_check
        %p268 = pneg %p267
      $region42: #{retina_get_face.1} parent=5 // pred_check_branch
        %270 = sbr.rel (%p268) target = $region44
      $region43: #{retina_get_face.1} parent=5 // pred_region
        // Predicated region
        $region45: #{retina_get_face.1} parent=43 // pred_check
          %p271 = pneg %p36
        $region46: #{retina_get_face.1} parent=43 // pred_check_branch
          %273 = sbr.rel (%p271) target = $region48
        $region47: #{retina_get_face.1} parent=43 // pred_region
          %p274 = scmp.lt.s32.totalorder %s16, 1
          %s275 = scalar_select %p274, %s16, 1
          %s276 = smul.addr %s275, 12
          %s277 = smul.addr %s276, 8
          %s278 = scalar_lea.vmem %s0, %s277
        $region48: #{retina_get_face.1} parent=43 // pred_fallthru
          _
      $region44: #{retina_get_face.1} parent=5 // pred_fallthru
        _
      %p279 = scmp.le.s32.totalorder 1, %s16
      %p280 = scmp.lt.s32.totalorder %s16, 3
      %p281 = pnand %p279, %p280
      %p282 = pneg %p281
      // Predicated region
      $region49: #{retina_get_face.1} parent=5 // pred_check
        _
      $region50: #{retina_get_face.1} parent=5 // pred_check_branch
        %284 = sbr.rel (%p281) target = $region52
      $region51: #{retina_get_face.1} parent=5 // pred_region
        %s285 = ssub.s32 %s16, 1
        // Predicated region
        $region53: #{retina_get_face.1} parent=51 // pred_check
          %p286 = pneg %p168
        $region54: #{retina_get_face.1} parent=51 // pred_check_branch
          %288 = sbr.rel (%p286) target = $region56
        $region55: #{retina_get_face.1} parent=51 // pred_region
          %289 = dma.done [#allocation3], 16
        $region56: #{retina_get_face.1} parent=51 // pred_fallthru
          _
        // Predicated region
        $region57: #{retina_get_face.1} parent=51 // pred_check
          %p290 = pneg %p189
        $region58: #{retina_get_face.1} parent=51 // pred_check_branch
          %292 = sbr.rel (%p290) target = $region60
        $region59: #{retina_get_face.1} parent=51 // pred_region
          %293 = dma.done [#allocation5], 16
        $region60: #{retina_get_face.1} parent=51 // pred_fallthru
          _
        %294 = sfence
        %p295 = scmp.lt.s32.totalorder %s21, 1
        %s296 = scalar_select %p295, %s21, 1
        %s297 = smul.addr %s296, 12
        %s298 = smul.addr %s297, 8
        %s299 = scalar_lea.vmem %s0, %s298
        %p300 = pneg %p42
        %p301 = pneg %p39
        %p302 = pneg %p63
        %p303 = pneg %p60
        %p304 = pneg %p84
        %p305 = pneg %p81
        %p306 = pneg %p105
        %p307 = pneg %p102
        %p308 = pneg %p126
        %p309 = pneg %p123
        %p310 = pneg %p147
        %p311 = pneg %p144
        %p312 = pneg %p168
        %p313 = pneg %p165
        %p314 = pneg %p189
        %p315 = pneg %p186
        %p316 = pneg %p215
        %p317 = pneg %p212
        %p318 = scmp.lt.s32.totalorder %s21, 1
        %s319 = scalar_select %p318, %s21, 1
        %s320 = smul.addr %s319, 2
        %s321 = smul.addr %s320, 8
        %s322 = scalar_lea.vmem %s8, %s321
        %p323 = scmp.lt.s32.totalorder %s21, 1
        %s324 = scalar_select %p323, %s21, 1
        %s325 = smul.addr %s324, 12
        %s326 = smul.addr %s325, 8
        %s327 = scalar_lea.vmem %s0, %s326
        %p328 = scmp.lt.s32.totalorder %s21, 1
        %s329 = scalar_select %p328, %s21, 1
        %s330 = smul.addr %s329, 2
        %s331 = smul.addr %s330, 8
        %s332 = scalar_lea.vmem %s8, %s331
        %v333 = vld [vmem:[%s327] sm:$0xff]
        %v334 = vld [vmem:[%s327 + $0x8] sm:$0xff]
        %v335 = vld [vmem:[%s327 + $0x10] sm:$0xff]
        %v336 = vld [vmem:[%s327 + $0x18] sm:$0xff]
        %v337 = vld [vmem:[%s327 + $0x20] sm:$0xff]
        %v338 = vld [vmem:[%s327 + $0x28] sm:$0xff]
        %v339 = vld [vmem:[%s327 + $0x30] sm:$0xff]
        %v340 = vld [vmem:[%s327 + $0x38] sm:$0xff]
        %v341 = vld [vmem:[%s327 + $0x40] sm:$0xff]
        %v342 = vld [vmem:[%s327 + $0x48] sm:$0xff]
        %v343 = vld [vmem:[%s327 + $0x50] sm:$0xff]
        %v344 = vld [vmem:[%s327 + $0x58] sm:$0xff]
        %v345 = vld [vmem:[%s1] sm:$0xff]
        %v346 = vld [vmem:[%s1 + $0x8] sm:$0xff]
        %v347 = vld [vmem:[%s1 + $0x10] sm:$0xff]
        %v348 = vld [vmem:[%s1 + $0x18] sm:$0xff]
        %v349 = vld [vmem:[%s1 + $0x20] sm:$0xff]
        %v350 = vld [vmem:[%s1 + $0x28] sm:$0xff]
        %v351 = vld [vmem:[%s1 + $0x30] sm:$0xff]
        %v352 = vld [vmem:[%s1 + $0x38] sm:$0xff]
        %v353 = vld [vmem:[%s1 + $0x40] sm:$0xff]
        %v354 = vld [vmem:[%s1 + $0x48] sm:$0xff]
        %v355 = vld [vmem:[%s1 + $0x50] sm:$0xff]
        %v356 = vld [vmem:[%s1 + $0x58] sm:$0xff]
        %v357 = vld [vmem:[%s1 + $0x60] sm:$0xff]
        %v358 = vld [vmem:[%s1 + $0x68] sm:$0xff]
        %v359 = vld [vmem:[%s1 + $0x70] sm:$0xff]
        %v360 = vld [vmem:[%s1 + $0x78] sm:$0xff]
        %v361 = vld [vmem:[%s1 + $0x80] sm:$0xff]
        %v362 = vld [vmem:[%s1 + $0x88] sm:$0xff]
        %v363 = vld [vmem:[%s1 + $0x90] sm:$0xff]
        %v364 = vld [vmem:[%s1 + $0x98] sm:$0xff]
        %v365 = vld [vmem:[%s1 + $0xa0] sm:$0xff]
        %v366 = vld [vmem:[%s1 + $0xa8] sm:$0xff]
        %v367 = vld [vmem:[%s1 + $0xb0] sm:$0xff]
        %v368 = vld [vmem:[%s1 + $0xb8] sm:$0xff]
        %v369 = vld [vmem:[%s1 + $0xc0] sm:$0xff]
        %v370 = vld [vmem:[%s1 + $0xc8] sm:$0xff]
        %v371 = vld [vmem:[%s1 + $0xd0] sm:$0xff]
        %v372 = vld [vmem:[%s1 + $0xd8] sm:$0xff]
        %v373 = vld [vmem:[%s1 + $0xe0] sm:$0xff]
        %v374 = vld [vmem:[%s1 + $0xe8] sm:$0xff]
        %v375 = vld [vmem:[%s1 + $0xf0] sm:$0xff]
        %v376 = vld [vmem:[%s1 + $0xf8] sm:$0xff]
        %v377 = vld [vmem:[%s1 + $0x100] sm:$0xff]
        %v378 = vld [vmem:[%s1 + $0x108] sm:$0xff]
        %v379 = vld [vmem:[%s1 + $0x110] sm:$0xff]
        %v380 = vld [vmem:[%s1 + $0x118] sm:$0xff]
        %v381 = vld [vmem:[%s1 + $0x120] sm:$0xff]
        %v382 = vld [vmem:[%s1 + $0x128] sm:$0xff]
        %v383 = vld [vmem:[%s1 + $0x130] sm:$0xff]
        %v384 = vld [vmem:[%s1 + $0x138] sm:$0xff]
        %v385 = vld [vmem:[%s1 + $0x140] sm:$0xff]
        %v386 = vld [vmem:[%s1 + $0x148] sm:$0xff]
        %v387 = vld [vmem:[%s1 + $0x150] sm:$0xff]
        %v388 = vld [vmem:[%s1 + $0x158] sm:$0xff]
        %v389 = vld [vmem:[%s1 + $0x160] sm:$0xff]
        %v390 = vld [vmem:[%s1 + $0x168] sm:$0xff]
        %v391 = vld [vmem:[%s1 + $0x170] sm:$0xff]
        %v392 = vld [vmem:[%s1 + $0x178] sm:$0xff]
        %s393 = sld [smem:[#allocation2 + $0x3]]
        %v394 = vstv %s393
        %395 = vmatprep.subr.mxu0 0.0
        %396 = vmatpush1.msra.mxu0 %v360
        %397 = vmatprep.subr.mxu0 0.0
        %398 = vmatpush1.msra.mxu0 %v359
        %399 = vmatprep.subr.mxu0 0.0
        %400 = vmatpush1.msra.mxu0 %v358
        %401 = vmatprep.subr.mxu0 0.0
        %402 = vmatpush1.msra.mxu0 %v357
        %403 = vmatprep.subr.mxu0 0.0
        %404 = vmatpush1.msra.mxu0 %v356
        %405 = vmatprep.subr.mxu0 0.0
        %406 = vmatpush1.msra.mxu0 %v355
        %407 = vmatprep.subr.mxu0 0.0
        %408 = vmatpush1.msra.mxu0 %v354
        %409 = vmatprep.subr.mxu0 0.0
        %410 = vmatpush1.msra.mxu0 %v353
        %411 = vmatprep.subr.mxu0 0.0
        %412 = vmatpush1.msra.mxu0 %v352
        %413 = vmatprep.subr.mxu0 0.0
        %414 = vmatpush1.msra.mxu0 %v351
        %415 = vmatprep.subr.mxu0 0.0
        %416 = vmatpush1.msra.mxu0 %v350
        %417 = vmatprep.subr.mxu0 0.0
        %418 = vmatpush1.msra.mxu0 %v349
        %419 = vmatprep.subr.mxu0 0.0
        %420 = vmatpush1.msra.mxu0 %v348
        %421 = vmatprep.subr.mxu0 0.0
        %422 = vmatpush1.msra.mxu0 %v347
        %423 = vmatprep.subr.mxu0 0.0
        %424 = vmatpush1.msra.mxu0 %v346
        %425 = vmatprep.subr.mxu0 0.0
        %426 = vmatpush1.msra.mxu0 %v345
        %427 = vmatprep.subr.mxu0 0.0
        %428 = vmatpush2.msra.mxu0 %v376
        %429 = vmatprep.subr.mxu0 0.0
        %430 = vmatpush2.msra.mxu0 %v375
        %431 = vmatprep.subr.mxu0 0.0
        %432 = vmatpush2.msra.mxu0 %v374
        %433 = vmatprep.subr.mxu0 0.0
        %434 = vmatpush2.msra.mxu0 %v373
        %435 = vmatprep.subr.mxu0 0.0
        %436 = vmatpush2.msra.mxu0 %v372
        %437 = vmatprep.subr.mxu0 0.0
        %438 = vmatpush2.msra.mxu0 %v371
        %439 = vmatprep.subr.mxu0 0.0
        %440 = vmatpush2.msra.mxu0 %v370
        %441 = vmatprep.subr.mxu0 0.0
        %442 = vmatpush2.msra.mxu0 %v369
        %443 = vmatprep.subr.mxu0 0.0
        %444 = vmatpush2.msra.mxu0 %v368
        %445 = vmatprep.subr.mxu0 0.0
        %446 = vmatpush2.msra.mxu0 %v367
        %447 = vmatprep.subr.mxu0 0.0
        %448 = vmatpush2.msra.mxu0 %v366
        %449 = vmatprep.subr.mxu0 0.0
        %450 = vmatpush2.msra.mxu0 %v365
        %451 = vmatprep.subr.mxu0 0.0
        %452 = vmatpush2.msra.mxu0 %v364
        %453 = vmatprep.subr.mxu0 0.0
        %454 = vmatpush2.msra.mxu0 %v363
        %455 = vmatprep.subr.mxu0 0.0
        %456 = vmatpush2.msra.mxu0 %v362
        %457 = vmatprep.subr.mxu0 0.0
        %458 = vmatpush2.msra.mxu0 %v361
        %459 = vmatprep.mubr.f32.mxu0 %v334
        %460 = vmatmul.mubr.f32.gmra.mxu0 %v333
        %v461 = vpop.f32.mrf.mxu0
        %v462 = vadd.f32 %v394, %v461
        %v463 = vpop.f32.mrf.mxu0
        %464 = vmatprep.mubr.f32.mxu0 %v337
        %465 = vmatmul.mubr.f32.gmra.mxu0 %v336
        %v466 = vpop.f32.mrf.mxu0
        %v467 = vadd.f32 %v394, %v466
        %v468 = vpop.f32.mrf.mxu0
        %469 = vmatprep.mubr.f32.mxu0 %v340
        %470 = vmatmul.mubr.f32.gmra.mxu0 %v339
        %v471 = vpop.f32.mrf.mxu0
        %v472 = vadd.f32 %v394, %v471
        %v473 = vpop.f32.mrf.mxu0
        %474 = vmatprep.mubr.f32.mxu0 %v343
        %475 = vmatmul.mubr.f32.gmra.mxu0 %v342
        %v476 = vpop.f32.mrf.mxu0
        %v477 = vadd.f32 %v394, %v476
        %v478 = vpop.f32.mrf.mxu0
        %479 = vdwg.mxu0
        %480 = vmatprep.subr.mxu0 0.0
        %481 = vmatpush1.msra.mxu0 %v392
        %482 = vmatprep.subr.mxu0 0.0
        %483 = vmatpush1.msra.mxu0 %v391
        %484 = vmatprep.subr.mxu0 0.0
        %485 = vmatpush1.msra.mxu0 %v390
        %486 = vmatprep.subr.mxu0 0.0
        %487 = vmatpush1.msra.mxu0 %v389
        %488 = vmatprep.subr.mxu0 0.0
        %489 = vmatpush1.msra.mxu0 %v388
        %490 = vmatprep.subr.mxu0 0.0
        %491 = vmatpush1.msra.mxu0 %v387
        %492 = vmatprep.subr.mxu0 0.0
        %493 = vmatpush1.msra.mxu0 %v386
        %494 = vmatprep.subr.mxu0 0.0
        %495 = vmatpush1.msra.mxu0 %v385
        %496 = vmatprep.subr.mxu0 0.0
        %497 = vmatpush1.msra.mxu0 %v384
        %498 = vmatprep.subr.mxu0 0.0
        %499 = vmatpush1.msra.mxu0 %v383
        %500 = vmatprep.subr.mxu0 0.0
        %501 = vmatpush1.msra.mxu0 %v382
        %502 = vmatprep.subr.mxu0 0.0
        %503 = vmatpush1.msra.mxu0 %v381
        %504 = vmatprep.subr.mxu0 0.0
        %505 = vmatpush1.msra.mxu0 %v380
        %506 = vmatprep.subr.mxu0 0.0
        %507 = vmatpush1.msra.mxu0 %v379
        %508 = vmatprep.subr.mxu0 0.0
        %509 = vmatpush1.msra.mxu0 %v378
        %510 = vmatprep.subr.mxu0 0.0
        %511 = vmatpush1.msra.mxu0 %v377
        %512 = vmatprep.subr.mxu0 0.0
        %513 = vmatpush2.msra.mxu0 0.0
        %514 = vmatprep.subr.mxu0 0.0
        %515 = vmatpush2.msra.mxu0 0.0
        %516 = vmatprep.subr.mxu0 0.0
        %517 = vmatpush2.msra.mxu0 0.0
        %518 = vmatprep.subr.mxu0 0.0
        %519 = vmatpush2.msra.mxu0 0.0
        %520 = vmatprep.subr.mxu0 0.0
        %521 = vmatpush2.msra.mxu0 0.0
        %522 = vmatprep.subr.mxu0 0.0
        %523 = vmatpush2.msra.mxu0 0.0
        %524 = vmatprep.subr.mxu0 0.0
        %525 = vmatpush2.msra.mxu0 0.0
        %526 = vmatprep.subr.mxu0 0.0
        %527 = vmatpush2.msra.mxu0 0.0
        %528 = vmatprep.subr.mxu0 0.0
        %529 = vmatpush2.msra.mxu0 0.0
        %530 = vmatprep.subr.mxu0 0.0
        %531 = vmatpush2.msra.mxu0 0.0
        %532 = vmatprep.subr.mxu0 0.0
        %533 = vmatpush2.msra.mxu0 0.0
        %534 = vmatprep.subr.mxu0 0.0
        %535 = vmatpush2.msra.mxu0 0.0
        %536 = vmatprep.subr.mxu0 0.0
        %537 = vmatpush2.msra.mxu0 0.0
        %538 = vmatprep.subr.mxu0 0.0
        %539 = vmatpush2.msra.mxu0 0.0
        %540 = vmatprep.subr.mxu0 0.0
        %541 = vmatpush2.msra.mxu0 0.0
        %542 = vmatprep.subr.mxu0 0.0
        %543 = vmatpush2.msra.mxu0 0.0
        %544 = vmatprep.mubr.f32.mxu0 0.0
        %545 = vmatmul.mubr.f32.gmra.mxu0 %v335
        %v546 = vpop.f32.mrf.mxu0
        %v547 = vadd.f32 %v462, %v546
        %v548 = vpop.f32.mrf.mxu0
        %549 = vmatprep.mubr.f32.mxu0 0.0
        %550 = vmatmul.mubr.f32.gmra.mxu0 %v338
        %v551 = vpop.f32.mrf.mxu0
        %v552 = vadd.f32 %v467, %v551
        %v553 = vpop.f32.mrf.mxu0
        %554 = vmatprep.mubr.f32.mxu0 0.0
        %555 = vmatmul.mubr.f32.gmra.mxu0 %v341
        %v556 = vpop.f32.mrf.mxu0
        %v557 = vadd.f32 %v472, %v556
        %v558 = vpop.f32.mrf.mxu0
        %559 = vmatprep.mubr.f32.mxu0 0.0
        %560 = vmatmul.mubr.f32.gmra.mxu0 %v344
        %v561 = vpop.f32.mrf.mxu0
        %v562 = vadd.f32 %v477, %v561
        %v563 = vpop.f32.mrf.mxu0
        %564 = vdwg.mxu0
        %v565 = vmax.f32 %v547, %v552
        %v566 = vmax.f32 %v557, %v562
        %v567 = vmax.f32 %v565, %v566
        %568 = vmax.xlane.f32.xlu0 %v567
        %v569 = vpop.xlane.xlu0 %568
        %v570 = vrot.slane %v569, 4
        %v571 = vmax.f32 %v569, %v570
        %v572 = vrot.slane %v571, 2
        %v573 = vmax.f32 %v571, %v572
        %v574 = vrot.slane %v573, 1
        %v575 = vmax.f32 %v573, %v574
        %s576 = vtos %v575
        %v577 = vstv %s576
        %vm578 = vcmp.ge.f32.partialorder %v547, %v577
        %vm579 = vcmp.ge.f32.partialorder %v552, %v577
        %vm580 = vcmp.ge.f32.partialorder %v557, %v577
        %vm581 = vcmp.ge.f32.partialorder %v562, %v577
        %v582 = vld [vmem:[%s5] sm:$0xff]
        %v583 = vld [vmem:[%s5 + $0x8] sm:$0xff]
        %v584 = vld [vmem:[%s5 + $0x10] sm:$0xff]
        %v585 = vld [vmem:[%s5 + $0x18] sm:$0xff]
        %v586 = vsel %vm578, %v582, 4096.0
        %v587 = vsel %vm579, %v583, 4096.0
        %v588 = vsel %vm580, %v584, 4096.0
        %v589 = vsel %vm581, %v585, 4096.0
        %v590 = vmin.f32 %v586, %v587
        %v591 = vmin.f32 %v588, %v589
        %v592 = vmin.f32 %v590, %v591
        %593 = vmin.xlane.f32.xlu0 %v592
        %v594 = vpop.xlane.xlu0 %593
        %v595 = vrot.slane %v594, 4
        %v596 = vmin.f32 %v594, %v595
        %v597 = vrot.slane %v596, 2
        %v598 = vmin.f32 %v596, %v597
        %v599 = vrot.slane %v598, 1
        %v600 = vmin.f32 %v598, %v599
        %s601 = vtos %v600
        %v602 = vrcp.pop 128.0
        %s603 = vtos %v602
        %s604 = smul.f32 %s601, %s603
        %s605 = sfloor.f32 %s604
        %s606 = smul.f32 %s605, 128.0
        %s607 = ssub.f32 %s601, %s606
        %s608 = scvt.f32.s32.to.zero.pseudo %s605
        %v609 = vlaneseq
        %v610 = vshrl.u32 %v609, 7
        %v611 = vadd.s32 %v610, 8
        %v612 = vadd.s32 %v610, 16
        %v613 = vadd.s32 %v610, 24
        %v614 = vstv %s608
        %vm615 = vcmp.eq.s32.totalorder %v610, %v614
        %vm616 = vcmp.eq.s32.totalorder %v611, %v614
        %vm617 = vcmp.eq.s32.totalorder %v612, %v614
        %vm618 = vcmp.eq.s32.totalorder %v613, %v614
        %v619 = vsel %vm615, 1, 0
        %v620 = vsel %vm616, 1, 0
        %v621 = vsel %vm617, 1, 0
        %v622 = vsel %vm618, 1, 0
        %v623 = vcvt.s32.f32 %v619
        %v624 = vcvt.s32.f32 %v620
        %v625 = vcvt.s32.f32 %v621
        %v626 = vcvt.s32.f32 %v622
        %v627 = vmul.f32 %v333, %v623
        %v628 = vmul.f32 %v334, %v623
        %v629 = vmul.f32 %v335, %v623
        %v630 = vmul.f32 %v336, %v624
        %v631 = vmul.f32 %v337, %v624
        %v632 = vmul.f32 %v338, %v624
        %v633 = vmul.f32 %v339, %v625
        %v634 = vmul.f32 %v340, %v625
        %v635 = vmul.f32 %v341, %v625
        %v636 = vmul.f32 %v342, %v626
        %v637 = vmul.f32 %v343, %v626
        %v638 = vmul.f32 %v344, %v626
        %v639 = vadd.f32 %v627, %v630
        %v640 = vadd.f32 %v639, %v633
        %v641 = vadd.f32 %v640, %v636
        %v642 = vrot.slane %v641, 4
        %v643 = vadd.f32 %v641, %v642
        %v644 = vrot.slane %v643, 2
        %v645 = vadd.f32 %v643, %v644
        %v646 = vrot.slane %v645, 1
        %v647 = vadd.f32 %v645, %v646
        %v648 = vadd.f32 %v628, %v631
        %v649 = vadd.f32 %v648, %v634
        %v650 = vadd.f32 %v649, %v637
        %v651 = vrot.slane %v650, 4
        %v652 = vadd.f32 %v650, %v651
        %v653 = vrot.slane %v652, 2
        %v654 = vadd.f32 %v652, %v653
        %v655 = vrot.slane %v654, 1
        %v656 = vadd.f32 %v654, %v655
        %v657 = vadd.f32 %v629, %v632
        %v658 = vadd.f32 %v657, %v635
        %v659 = vadd.f32 %v658, %v638
        %v660 = vrot.slane %v659, 4
        %v661 = vadd.f32 %v659, %v660
        %v662 = vrot.slane %v661, 2
        %v663 = vadd.f32 %v661, %v662
        %v664 = vrot.slane %v663, 1
        %v665 = vadd.f32 %v663, %v664
        %v666 = vlaneseq
        %v667 = vand.u32 %v666, 127
        %v668 = vadd.s32 %v667, 128
        %v669 = vadd.s32 %v667, 256
        %s670 = smul.f32 %s607, 3.0
        %s671 = scvt.f32.s32.to.zero.pseudo %s670
        %v672 = vstv %s671
        %vm673 = vcmp.eq.s32.totalorder %v667, %v672
        %vm674 = vcmp.eq.s32.totalorder %v668, %v672
        %vm675 = vcmp.eq.s32.totalorder %v669, %v672
        %v676 = vsel %vm673, 1, 0
        %v677 = vsel %vm674, 1, 0
        %v678 = vsel %vm675, 1, 0
        %v679 = vcvt.s32.f32 %v676
        %v680 = vcvt.s32.f32 %v677
        %v681 = vcvt.s32.f32 %v678
        %v682 = vmul.f32 %v647, %v679
        %v683 = vmul.f32 %v656, %v680
        %v684 = vmul.f32 %v665, %v681
        %vm685 = vcmask 1040384
        %v686 = vsel %vm685, %v682, 0.0
        %v687 = vsel %vm685, %v683, 0.0
        %v688 = vadd.f32 %v686, %v687
        %v689 = vsel %vm685, %v684, 0.0
        %v690 = vadd.f32 %v688, %v689
        %691 = vadd.xlane.f32.xlu0 %v690
        %v692 = vpop.xlane.xlu0 %691
        %v693 = vrot.slane %v692, 4
        %v694 = vadd.f32 %v692, %v693
        %v695 = vrot.slane %v694, 2
        %v696 = vadd.f32 %v694, %v695
        %v697 = vrot.slane %v696, 1
        %v698 = vadd.f32 %v696, %v697
        %s699 = vtos %v698
        %s700 = sadd.s32 %s671, 1
        %v701 = vstv %s700
        %vm702 = vcmp.eq.s32.totalorder %v667, %v701
        %vm703 = vcmp.eq.s32.totalorder %v668, %v701
        %vm704 = vcmp.eq.s32.totalorder %v669, %v701
        %v705 = vsel %vm702, 1, 0
        %v706 = vsel %vm703, 1, 0
        %v707 = vsel %vm704, 1, 0
        %v708 = vcvt.s32.f32 %v705
        %v709 = vcvt.s32.f32 %v706
        %v710 = vcvt.s32.f32 %v707
        %v711 = vmul.f32 %v647, %v708
        %v712 = vmul.f32 %v656, %v709
        %v713 = vmul.f32 %v665, %v710
        %v714 = vsel %vm685, %v711, 0.0
        %v715 = vsel %vm685, %v712, 0.0
        %v716 = vadd.f32 %v714, %v715
        %v717 = vsel %vm685, %v713, 0.0
        %v718 = vadd.f32 %v716, %v717
        %719 = vadd.xlane.f32.xlu0 %v718
        %v720 = vpop.xlane.xlu0 %719
        %v721 = vrot.slane %v720, 4
        %v722 = vadd.f32 %v720, %v721
        %v723 = vrot.slane %v722, 2
        %v724 = vadd.f32 %v722, %v723
        %v725 = vrot.slane %v724, 1
        %v726 = vadd.f32 %v724, %v725
        %s727 = vtos %v726
        %s728 = sadd.s32 %s671, 2
        %v729 = vstv %s728
        %vm730 = vcmp.eq.s32.totalorder %v667, %v729
        %vm731 = vcmp.eq.s32.totalorder %v668, %v729
        %vm732 = vcmp.eq.s32.totalorder %v669, %v729
        %v733 = vsel %vm730, 1, 0
        %v734 = vsel %vm731, 1, 0
        %v735 = vsel %vm732, 1, 0
        %v736 = vcvt.s32.f32 %v733
        %v737 = vcvt.s32.f32 %v734
        %v738 = vcvt.s32.f32 %v735
        %v739 = vmul.f32 %v647, %v736
        %v740 = vmul.f32 %v656, %v737
        %v741 = vmul.f32 %v665, %v738
        %v742 = vsel %vm685, %v739, 0.0
        %v743 = vsel %vm685, %v740, 0.0
        %v744 = vadd.f32 %v742, %v743
        %v745 = vsel %vm685, %v741, 0.0
        %v746 = vadd.f32 %v744, %v745
        %747 = vadd.xlane.f32.xlu0 %v746
        %v748 = vpop.xlane.xlu0 %747
        %v749 = vrot.slane %v748, 4
        %v750 = vadd.f32 %v748, %v749
        %v751 = vrot.slane %v750, 2
        %v752 = vadd.f32 %v750, %v751
        %v753 = vrot.slane %v752, 1
        %v754 = vadd.f32 %v752, %v753
        %s755 = vtos %v754
        %s756 = sld [smem:[#allocation4]]
        %s757 = smul.f32 %s699, %s756
        %s758 = sld [smem:[#allocation4 + $0x4]]
        %s759 = smul.f32 %s727, %s758
        %s760 = sadd.f32 %s757, %s759
        %s761 = sld [smem:[#allocation4 + $0x8]]
        %s762 = smul.f32 %s755, %s761
        %s763 = sadd.f32 %s760, %s762
        %s764 = sld [smem:[#allocation4 + $0xc]]
        %s765 = sadd.f32 %s764, %s763
        %s766 = sld [smem:[#allocation4 + $0x1]]
        %s767 = smul.f32 %s699, %s766
        %s768 = sld [smem:[#allocation4 + $0x5]]
        %s769 = smul.f32 %s727, %s768
        %s770 = sadd.f32 %s767, %s769
        %s771 = sld [smem:[#allocation4 + $0x9]]
        %s772 = smul.f32 %s755, %s771
        %s773 = sadd.f32 %s770, %s772
        %s774 = sld [smem:[#allocation4 + $0xd]]
        %s775 = sadd.f32 %s774, %s773
        %s776 = sld [smem:[#allocation4 + $0x2]]
        %s777 = smul.f32 %s699, %s776
        %s778 = sld [smem:[#allocation4 + $0x6]]
        %s779 = smul.f32 %s727, %s778
        %s780 = sadd.f32 %s777, %s779
        %s781 = sld [smem:[#allocation4 + $0xa]]
        %s782 = smul.f32 %s755, %s781
        %s783 = sadd.f32 %s780, %s782
        %s784 = sld [smem:[#allocation4 + $0xe]]
        %s785 = sadd.f32 %s784, %s783
        %s786 = sld [smem:[#allocation4 + $0x3]]
        %s787 = smul.f32 %s699, %s786
        %s788 = sld [smem:[#allocation4 + $0x7]]
        %s789 = smul.f32 %s727, %s788
        %s790 = sadd.f32 %s787, %s789
        %s791 = sld [smem:[#allocation4 + $0xb]]
        %s792 = smul.f32 %s755, %s791
        %s793 = sadd.f32 %s790, %s792
        %s794 = sld [smem:[#allocation4 + $0xf]]
        %s795 = sadd.f32 %s794, %s793
        %v796 = vstv %s785
        %v797 = vtanh.pop %v796
        %s798 = vtos %v797
        %s799 = smul.f32 %s798, 2.0
        %s800 = sadd.f32 %s607, %s799
        %v801 = vstv %s795
        %v802 = vtanh.pop %v801
        %s803 = vtos %v802
        %s804 = smul.f32 %s803, 2.0
        %s805 = sadd.f32 %s605, %s804
        %s806 = sxor.u32 %s765, 2147483648
        %v807 = vstv %s806
        %v808 = vmul.f32 %v807, 1.442695
        %v809 = vpow.pop %v808
        %s810 = vtos %v809
        %s811 = sadd.f32 %s810, 1.0
        %v812 = vstv %s811
        %v813 = vrcp.pop %v812
        %s814 = vtos %v813
        %s815 = smul.f32 %s814, 21.333334
        %s816 = sadd.f32 %s815, 2.0
        %s817 = sxor.u32 %s775, 2147483648
        %v818 = vstv %s817
        %v819 = vmul.f32 %v818, 1.442695
        %v820 = vpow.pop %v819
        %s821 = vtos %v820
        %s822 = sadd.f32 %s821, 1.0
        %v823 = vstv %s822
        %v824 = vrcp.pop %v823
        %s825 = vtos %v824
        %s826 = smul.f32 %s825, 5.3333335
        %s827 = sadd.f32 %s826, 2.0
        %s828 = ssub.f32 %s800, %s816
        %s829 = smax.f32 %s828, 0.0
        %s830 = smin.f32 %s829, 127.0
        %s831 = sadd.f32 %s800, %s816
        %s832 = smax.f32 %s831, 0.0
        %s833 = smin.f32 %s832, 127.0
        %s834 = ssub.f32 %s805, %s827
        %s835 = smax.f32 %s834, 0.0
        %s836 = smin.f32 %s835, 31.0
        %s837 = sadd.f32 %s805, %s827
        %s838 = smax.f32 %s837, 0.0
        %s839 = smin.f32 %s838, 31.0
        %s840 = ssub.f32 %s833, %s830
        %s841 = ssub.f32 %s839, %s836
        %v842 = vrcp.pop 4.0
        %s843 = vtos %v842
        %s844 = smul.f32 %s840, %s843
        %s845 = smul.f32 %s844, 0.5
        %v846 = vrcp.pop 4.0
        %s847 = vtos %v846
        %s848 = smul.f32 %s841, %s847
        %s849 = smul.f32 %s848, 0.5
        %s850 = ssub.f32 %s836, %s849
        %s851 = sfloor.f32 %s850
        %s852 = scvt.f32.s32.to.zero.pseudo %s851
        %p853 = scmp.gt.s32.totalorder %s852, 0
        %s854 = scalar_select %p853, %s852, 0
        %s855 = sadd.f32 %s839, %s849
        %s856 = sfloor.f32 %s855
        %s857 = scvt.f32.s32.to.zero.pseudo %s856
        %s858 = sadd.s32 %s857, 1
        %p859 = scmp.lt.s32.totalorder %s858, 32
        %s860 = scalar_select %p859, %s858, 32
        %s861 = ssub.f32 %s830, %s845
        %s862 = sfloor.f32 %s861
        %s863 = scvt.f32.s32.to.zero.pseudo %s862
        %p864 = scmp.gt.s32.totalorder %s863, 0
        %s865 = scalar_select %p864, %s863, 0
        %s866 = sadd.f32 %s833, %s845
        %s867 = sfloor.f32 %s866
        %s868 = scvt.f32.s32.to.zero.pseudo %s867
        %s869 = sadd.s32 %s868, 1
        %p870 = scmp.lt.s32.totalorder %s869, 128
        %s871 = scalar_select %p870, %s869, 128
        %s872 = ssub.s32 %s860, %s854
        %s873 = scvt.s32.f32 %s872
        %s874 = ssub.s32 %s871, %s865
        %s875 = scvt.s32.f32 %s874
        %s876 = scvt.s32.f32 %s854
        %s877 = scvt.s32.f32 %s865
        %v878 = vcvt.s32.f32 %v610
        %v879 = vcvt.s32.f32 %v611
        %v880 = vcvt.s32.f32 %v667
        %v881 = vadd.f32 %v878, 0.5
        %v882 = vadd.f32 %v879, 0.5
        %v883 = vrcp.pop 16.0
        %s884 = vtos %v883
        %s885 = smul.f32 %s873, %s884
        %v886 = vstv %s885
        %v887 = vmul.f32 %v881, %v886
        %v888 = vmul.f32 %v882, %v886
        %v889 = vsub.f32 %v887, 0.5
        %v890 = vsub.f32 %v888, 0.5
        %s891 = ssub.f32 %s873, 1.0
        %v892 = vmax.f32 %v889, 0.0
        %v893 = vmax.f32 %v890, 0.0
        %v894 = vstv %s891
        %v895 = vmin.f32 %v894, %v892
        %v896 = vmin.f32 %v894, %v893
        %v897 = vfloor.f32 %v895
        %v898 = vfloor.f32 %v896
        %v899 = vsub.f32 %v895, %v897
        %v900 = vsub.f32 %v896, %v898
        %v901 = vadd.f32 %v897, 1.0
        %v902 = vadd.f32 %v898, 1.0
        %v903 = vmin.f32 %v901, %v894
        %v904 = vmin.f32 %v902, %v894
        %v905 = vstv %s876
        %v906 = vadd.f32 %v905, %v897
        %v907 = vadd.f32 %v905, %v898
        %vm908 = vcmp.eq.f32.partialorder %v880, %v906
        %vm909 = vcmp.eq.f32.partialorder %v880, %v907
        %v910 = vsel %vm908, 1, 0
        %v911 = vsel %vm909, 1, 0
        %v912 = vcvt.s32.f32 %v910
        %v913 = vcvt.s32.f32 %v911
        %v914 = vsub.f32 1.0, %v899
        %v915 = vsub.f32 1.0, %v900
        %v916 = vmul.f32 %v912, %v914
        %v917 = vmul.f32 %v913, %v915
        %v918 = vadd.f32 %v905, %v903
        %v919 = vadd.f32 %v905, %v904
        %vm920 = vcmp.eq.f32.partialorder %v880, %v918
        %vm921 = vcmp.eq.f32.partialorder %v880, %v919
        %v922 = vsel %vm920, 1, 0
        %v923 = vsel %vm921, 1, 0
        %v924 = vcvt.s32.f32 %v922
        %v925 = vcvt.s32.f32 %v923
        %v926 = vmul.f32 %v924, %v899
        %v927 = vmul.f32 %v925, %v900
        %v928 = vadd.f32 %v916, %v926
        %v929 = vadd.f32 %v917, %v927
        %v930 = vld [vmem:[%s4] sm:$0x1]
        %v931 = vadd.f32 %v930, 0.5
        %v932 = vrcp.pop 16.0
        %s933 = vtos %v932
        %s934 = smul.f32 %s875, %s933
        %v935 = vstv %s934
        %v936 = vmul.f32 %v931, %v935
        %v937 = vsub.f32 %v936, 0.5
        %s938 = ssub.f32 %s875, 1.0
        %v939 = vmax.f32 %v937, 0.0
        %v940 = vstv %s938
        %v941 = vmin.f32 %v940, %v939
        %v942 = vfloor.f32 %v941
        %v943 = vsub.f32 %v941, %v942
        %v944 = vadd.f32 %v942, 1.0
        %v945 = vmin.f32 %v944, %v940
        %v946 = vld [vmem:[%s2] sm:$0xff]
        %v947 = vld [vmem:[%s2 + $0x8] sm:$0xff]
        %v948 = vld [vmem:[%s2 + $0x10] sm:$0xff]
        %v949 = vld [vmem:[%s2 + $0x18] sm:$0xff]
        %v950 = vld [vmem:[%s2 + $0x20] sm:$0xff]
        %v951 = vld [vmem:[%s2 + $0x28] sm:$0xff]
        %v952 = vld [vmem:[%s2 + $0x30] sm:$0xff]
        %v953 = vld [vmem:[%s2 + $0x38] sm:$0xff]
        %v954 = vld [vmem:[%s2 + $0x40] sm:$0xff]
        %v955 = vld [vmem:[%s2 + $0x48] sm:$0xff]
        %v956 = vld [vmem:[%s2 + $0x50] sm:$0xff]
        %v957 = vld [vmem:[%s2 + $0x58] sm:$0xff]
        %v958 = vld [vmem:[%s2 + $0x60] sm:$0xff]
        %v959 = vld [vmem:[%s2 + $0x68] sm:$0xff]
        %v960 = vld [vmem:[%s2 + $0x70] sm:$0xff]
        %v961 = vld [vmem:[%s2 + $0x78] sm:$0xff]
        %v962 = vld [vmem:[%s2 + $0x80] sm:$0xff]
        %v963 = vld [vmem:[%s2 + $0x88] sm:$0xff]
        %v964 = vld [vmem:[%s2 + $0x90] sm:$0xff]
        %v965 = vld [vmem:[%s2 + $0x98] sm:$0xff]
        %v966 = vld [vmem:[%s2 + $0xa0] sm:$0xff]
        %v967 = vld [vmem:[%s2 + $0xa8] sm:$0xff]
        %v968 = vld [vmem:[%s2 + $0xb0] sm:$0xff]
        %v969 = vld [vmem:[%s2 + $0xb8] sm:$0xff]
        %v970 = vld [vmem:[%s2 + $0xc0] sm:$0xff]
        %v971 = vld [vmem:[%s2 + $0xc8] sm:$0xff]
        %v972 = vld [vmem:[%s2 + $0xd0] sm:$0xff]
        %v973 = vld [vmem:[%s2 + $0xd8] sm:$0xff]
        %v974 = vld [vmem:[%s2 + $0xe0] sm:$0xff]
        %v975 = vld [vmem:[%s2 + $0xe8] sm:$0xff]
        %v976 = vld [vmem:[%s2 + $0xf0] sm:$0xff]
        %v977 = vld [vmem:[%s2 + $0xf8] sm:$0xff]
        %v978 = vld [vmem:[%s2 + $0x100] sm:$0xff]
        %v979 = vld [vmem:[%s2 + $0x108] sm:$0xff]
        %v980 = vld [vmem:[%s2 + $0x110] sm:$0xff]
        %v981 = vld [vmem:[%s2 + $0x118] sm:$0xff]
        %v982 = vld [vmem:[%s2 + $0x120] sm:$0xff]
        %v983 = vld [vmem:[%s2 + $0x128] sm:$0xff]
        %v984 = vld [vmem:[%s2 + $0x130] sm:$0xff]
        %v985 = vld [vmem:[%s2 + $0x138] sm:$0xff]
        %v986 = vld [vmem:[%s2 + $0x140] sm:$0xff]
        %v987 = vld [vmem:[%s2 + $0x148] sm:$0xff]
        %v988 = vld [vmem:[%s2 + $0x150] sm:$0xff]
        %v989 = vld [vmem:[%s2 + $0x158] sm:$0xff]
        %v990 = vld [vmem:[%s2 + $0x160] sm:$0xff]
        %v991 = vld [vmem:[%s2 + $0x168] sm:$0xff]
        %v992 = vld [vmem:[%s2 + $0x170] sm:$0xff]
        %v993 = vld [vmem:[%s2 + $0x178] sm:$0xff]
        %v994 = vstv %s877
        %v995 = vadd.f32 %v994, %v942
        %v997 = vlaneseq
        %v998 = vshrl.u32 %v997, 7
        %v999 = vsub.s32 0, %v998
        %v1000 = vrot.slane %v995, %v999
        %vm1002 = vcmp.eq.f32.partialorder %v946, %v1000
        %vm1003 = vcmp.eq.f32.partialorder %v947, %v1000
        %vm1004 = vcmp.eq.f32.partialorder %v948, %v1000
        %vm1005 = vcmp.eq.f32.partialorder %v949, %v1000
        %vm1006 = vcmp.eq.f32.partialorder %v950, %v1000
        %vm1007 = vcmp.eq.f32.partialorder %v951, %v1000
        %vm1008 = vcmp.eq.f32.partialorder %v952, %v1000
        %vm1009 = vcmp.eq.f32.partialorder %v953, %v1000
        %vm1010 = vcmp.eq.f32.partialorder %v954, %v1000
        %vm1011 = vcmp.eq.f32.partialorder %v955, %v1000
        %vm1012 = vcmp.eq.f32.partialorder %v956, %v1000
        %vm1013 = vcmp.eq.f32.partialorder %v957, %v1000
        %vm1014 = vcmp.eq.f32.partialorder %v958, %v1000
        %vm1015 = vcmp.eq.f32.partialorder %v959, %v1000
        %vm1016 = vcmp.eq.f32.partialorder %v960, %v1000
        %vm1017 = vcmp.eq.f32.partialorder %v961, %v1000
        %vm1018 = vcmp.eq.f32.partialorder %v962, %v1000
        %vm1019 = vcmp.eq.f32.partialorder %v963, %v1000
        %vm1020 = vcmp.eq.f32.partialorder %v964, %v1000
        %vm1021 = vcmp.eq.f32.partialorder %v965, %v1000
        %vm1022 = vcmp.eq.f32.partialorder %v966, %v1000
        %vm1023 = vcmp.eq.f32.partialorder %v967, %v1000
        %vm1024 = vcmp.eq.f32.partialorder %v968, %v1000
        %vm1025 = vcmp.eq.f32.partialorder %v969, %v1000
        %vm1026 = vcmp.eq.f32.partialorder %v970, %v1000
        %vm1027 = vcmp.eq.f32.partialorder %v971, %v1000
        %vm1028 = vcmp.eq.f32.partialorder %v972, %v1000
        %vm1029 = vcmp.eq.f32.partialorder %v973, %v1000
        %vm1030 = vcmp.eq.f32.partialorder %v974, %v1000
        %vm1031 = vcmp.eq.f32.partialorder %v975, %v1000
        %vm1032 = vcmp.eq.f32.partialorder %v976, %v1000
        %vm1033 = vcmp.eq.f32.partialorder %v977, %v1000
        %vm1034 = vcmp.eq.f32.partialorder %v978, %v1000
        %vm1035 = vcmp.eq.f32.partialorder %v979, %v1000
        %vm1036 = vcmp.eq.f32.partialorder %v980, %v1000
        %vm1037 = vcmp.eq.f32.partialorder %v981, %v1000
        %vm1038 = vcmp.eq.f32.partialorder %v982, %v1000
        %vm1039 = vcmp.eq.f32.partialorder %v983, %v1000
        %vm1040 = vcmp.eq.f32.partialorder %v984, %v1000
        %vm1041 = vcmp.eq.f32.partialorder %v985, %v1000
        %vm1042 = vcmp.eq.f32.partialorder %v986, %v1000
        %vm1043 = vcmp.eq.f32.partialorder %v987, %v1000
        %vm1044 = vcmp.eq.f32.partialorder %v988, %v1000
        %vm1045 = vcmp.eq.f32.partialorder %v989, %v1000
        %vm1046 = vcmp.eq.f32.partialorder %v990, %v1000
        %vm1047 = vcmp.eq.f32.partialorder %v991, %v1000
        %vm1048 = vcmp.eq.f32.partialorder %v992, %v1000
        %vm1049 = vcmp.eq.f32.partialorder %v993, %v1000
        %v1050 = vsel %vm1002, 1, 0
        %v1051 = vsel %vm1003, 1, 0
        %v1052 = vsel %vm1004, 1, 0
        %v1053 = vsel %vm1005, 1, 0
        %v1054 = vsel %vm1006, 1, 0
        %v1055 = vsel %vm1007, 1, 0
        %v1056 = vsel %vm1008, 1, 0
        %v1057 = vsel %vm1009, 1, 0
        %v1058 = vsel %vm1010, 1, 0
        %v1059 = vsel %vm1011, 1, 0
        %v1060 = vsel %vm1012, 1, 0
        %v1061 = vsel %vm1013, 1, 0
        %v1062 = vsel %vm1014, 1, 0
        %v1063 = vsel %vm1015, 1, 0
        %v1064 = vsel %vm1016, 1, 0
        %v1065 = vsel %vm1017, 1, 0
        %v1066 = vsel %vm1018, 1, 0
        %v1067 = vsel %vm1019, 1, 0
        %v1068 = vsel %vm1020, 1, 0
        %v1069 = vsel %vm1021, 1, 0
        %v1070 = vsel %vm1022, 1, 0
        %v1071 = vsel %vm1023, 1, 0
        %v1072 = vsel %vm1024, 1, 0
        %v1073 = vsel %vm1025, 1, 0
        %v1074 = vsel %vm1026, 1, 0
        %v1075 = vsel %vm1027, 1, 0
        %v1076 = vsel %vm1028, 1, 0
        %v1077 = vsel %vm1029, 1, 0
        %v1078 = vsel %vm1030, 1, 0
        %v1079 = vsel %vm1031, 1, 0
        %v1080 = vsel %vm1032, 1, 0
        %v1081 = vsel %vm1033, 1, 0
        %v1082 = vsel %vm1034, 1, 0
        %v1083 = vsel %vm1035, 1, 0
        %v1084 = vsel %vm1036, 1, 0
        %v1085 = vsel %vm1037, 1, 0
        %v1086 = vsel %vm1038, 1, 0
        %v1087 = vsel %vm1039, 1, 0
        %v1088 = vsel %vm1040, 1, 0
        %v1089 = vsel %vm1041, 1, 0
        %v1090 = vsel %vm1042, 1, 0
        %v1091 = vsel %vm1043, 1, 0
        %v1092 = vsel %vm1044, 1, 0
        %v1093 = vsel %vm1045, 1, 0
        %v1094 = vsel %vm1046, 1, 0
        %v1095 = vsel %vm1047, 1, 0
        %v1096 = vsel %vm1048, 1, 0
        %v1097 = vsel %vm1049, 1, 0
        %v1098 = vcvt.s32.f32 %v1050
        %v1099 = vcvt.s32.f32 %v1051
        %v1100 = vcvt.s32.f32 %v1052
        %v1101 = vcvt.s32.f32 %v1053
        %v1102 = vcvt.s32.f32 %v1054
        %v1103 = vcvt.s32.f32 %v1055
        %v1104 = vcvt.s32.f32 %v1056
        %v1105 = vcvt.s32.f32 %v1057
        %v1106 = vcvt.s32.f32 %v1058
        %v1107 = vcvt.s32.f32 %v1059
        %v1108 = vcvt.s32.f32 %v1060
        %v1109 = vcvt.s32.f32 %v1061
        %v1110 = vcvt.s32.f32 %v1062
        %v1111 = vcvt.s32.f32 %v1063
        %v1112 = vcvt.s32.f32 %v1064
        %v1113 = vcvt.s32.f32 %v1065
        %v1114 = vcvt.s32.f32 %v1066
        %v1115 = vcvt.s32.f32 %v1067
        %v1116 = vcvt.s32.f32 %v1068
        %v1117 = vcvt.s32.f32 %v1069
        %v1118 = vcvt.s32.f32 %v1070
        %v1119 = vcvt.s32.f32 %v1071
        %v1120 = vcvt.s32.f32 %v1072
        %v1121 = vcvt.s32.f32 %v1073
        %v1122 = vcvt.s32.f32 %v1074
        %v1123 = vcvt.s32.f32 %v1075
        %v1124 = vcvt.s32.f32 %v1076
        %v1125 = vcvt.s32.f32 %v1077
        %v1126 = vcvt.s32.f32 %v1078
        %v1127 = vcvt.s32.f32 %v1079
        %v1128 = vcvt.s32.f32 %v1080
        %v1129 = vcvt.s32.f32 %v1081
        %v1130 = vcvt.s32.f32 %v1082
        %v1131 = vcvt.s32.f32 %v1083
        %v1132 = vcvt.s32.f32 %v1084
        %v1133 = vcvt.s32.f32 %v1085
        %v1134 = vcvt.s32.f32 %v1086
        %v1135 = vcvt.s32.f32 %v1087
        %v1136 = vcvt.s32.f32 %v1088
        %v1137 = vcvt.s32.f32 %v1089
        %v1138 = vcvt.s32.f32 %v1090
        %v1139 = vcvt.s32.f32 %v1091
        %v1140 = vcvt.s32.f32 %v1092
        %v1141 = vcvt.s32.f32 %v1093
        %v1142 = vcvt.s32.f32 %v1094
        %v1143 = vcvt.s32.f32 %v1095
        %v1144 = vcvt.s32.f32 %v1096
        %v1145 = vcvt.s32.f32 %v1097
        %v1146 = vsub.f32 1.0, %v943
        %v1148 = vlaneseq
        %v1149 = vshrl.u32 %v1148, 7
        %v1150 = vsub.s32 0, %v1149
        %v1151 = vrot.slane %v1146, %v1150
        %v1153 = vmul.f32 %v1098, %v1151
        %v1154 = vmul.f32 %v1099, %v1151
        %v1155 = vmul.f32 %v1100, %v1151
        %v1156 = vmul.f32 %v1101, %v1151
        %v1157 = vmul.f32 %v1102, %v1151
        %v1158 = vmul.f32 %v1103, %v1151
        %v1159 = vmul.f32 %v1104, %v1151
        %v1160 = vmul.f32 %v1105, %v1151
        %v1161 = vmul.f32 %v1106, %v1151
        %v1162 = vmul.f32 %v1107, %v1151
        %v1163 = vmul.f32 %v1108, %v1151
        %v1164 = vmul.f32 %v1109, %v1151
        %v1165 = vmul.f32 %v1110, %v1151
        %v1166 = vmul.f32 %v1111, %v1151
        %v1167 = vmul.f32 %v1112, %v1151
        %v1168 = vmul.f32 %v1113, %v1151
        %v1169 = vmul.f32 %v1114, %v1151
        %v1170 = vmul.f32 %v1115, %v1151
        %v1171 = vmul.f32 %v1116, %v1151
        %v1172 = vmul.f32 %v1117, %v1151
        %v1173 = vmul.f32 %v1118, %v1151
        %v1174 = vmul.f32 %v1119, %v1151
        %v1175 = vmul.f32 %v1120, %v1151
        %v1176 = vmul.f32 %v1121, %v1151
        %v1177 = vmul.f32 %v1122, %v1151
        %v1178 = vmul.f32 %v1123, %v1151
        %v1179 = vmul.f32 %v1124, %v1151
        %v1180 = vmul.f32 %v1125, %v1151
        %v1181 = vmul.f32 %v1126, %v1151
        %v1182 = vmul.f32 %v1127, %v1151
        %v1183 = vmul.f32 %v1128, %v1151
        %v1184 = vmul.f32 %v1129, %v1151
        %v1185 = vmul.f32 %v1130, %v1151
        %v1186 = vmul.f32 %v1131, %v1151
        %v1187 = vmul.f32 %v1132, %v1151
        %v1188 = vmul.f32 %v1133, %v1151
        %v1189 = vmul.f32 %v1134, %v1151
        %v1190 = vmul.f32 %v1135, %v1151
        %v1191 = vmul.f32 %v1136, %v1151
        %v1192 = vmul.f32 %v1137, %v1151
        %v1193 = vmul.f32 %v1138, %v1151
        %v1194 = vmul.f32 %v1139, %v1151
        %v1195 = vmul.f32 %v1140, %v1151
        %v1196 = vmul.f32 %v1141, %v1151
        %v1197 = vmul.f32 %v1142, %v1151
        %v1198 = vmul.f32 %v1143, %v1151
        %v1199 = vmul.f32 %v1144, %v1151
        %v1200 = vmul.f32 %v1145, %v1151
        %v1201 = vadd.f32 %v994, %v945
        %v1203 = vlaneseq
        %v1204 = vshrl.u32 %v1203, 7
        %v1205 = vsub.s32 0, %v1204
        %v1206 = vrot.slane %v1201, %v1205
        %vm1208 = vcmp.eq.f32.partialorder %v946, %v1206
        %vm1209 = vcmp.eq.f32.partialorder %v947, %v1206
        %vm1210 = vcmp.eq.f32.partialorder %v948, %v1206
        %vm1211 = vcmp.eq.f32.partialorder %v949, %v1206
        %vm1212 = vcmp.eq.f32.partialorder %v950, %v1206
        %vm1213 = vcmp.eq.f32.partialorder %v951, %v1206
        %vm1214 = vcmp.eq.f32.partialorder %v952, %v1206
        %vm1215 = vcmp.eq.f32.partialorder %v953, %v1206
        %vm1216 = vcmp.eq.f32.partialorder %v954, %v1206
        %vm1217 = vcmp.eq.f32.partialorder %v955, %v1206
        %vm1218 = vcmp.eq.f32.partialorder %v956, %v1206
        %vm1219 = vcmp.eq.f32.partialorder %v957, %v1206
        %vm1220 = vcmp.eq.f32.partialorder %v958, %v1206
        %vm1221 = vcmp.eq.f32.partialorder %v959, %v1206
        %vm1222 = vcmp.eq.f32.partialorder %v960, %v1206
        %vm1223 = vcmp.eq.f32.partialorder %v961, %v1206
        %vm1224 = vcmp.eq.f32.partialorder %v962, %v1206
        %vm1225 = vcmp.eq.f32.partialorder %v963, %v1206
        %vm1226 = vcmp.eq.f32.partialorder %v964, %v1206
        %vm1227 = vcmp.eq.f32.partialorder %v965, %v1206
        %vm1228 = vcmp.eq.f32.partialorder %v966, %v1206
        %vm1229 = vcmp.eq.f32.partialorder %v967, %v1206
        %vm1230 = vcmp.eq.f32.partialorder %v968, %v1206
        %vm1231 = vcmp.eq.f32.partialorder %v969, %v1206
        %vm1232 = vcmp.eq.f32.partialorder %v970, %v1206
        %vm1233 = vcmp.eq.f32.partialorder %v971, %v1206
        %vm1234 = vcmp.eq.f32.partialorder %v972, %v1206
        %vm1235 = vcmp.eq.f32.partialorder %v973, %v1206
        %vm1236 = vcmp.eq.f32.partialorder %v974, %v1206
        %vm1237 = vcmp.eq.f32.partialorder %v975, %v1206
        %vm1238 = vcmp.eq.f32.partialorder %v976, %v1206
        %vm1239 = vcmp.eq.f32.partialorder %v977, %v1206
        %vm1240 = vcmp.eq.f32.partialorder %v978, %v1206
        %vm1241 = vcmp.eq.f32.partialorder %v979, %v1206
        %vm1242 = vcmp.eq.f32.partialorder %v980, %v1206
        %vm1243 = vcmp.eq.f32.partialorder %v981, %v1206
        %vm1244 = vcmp.eq.f32.partialorder %v982, %v1206
        %vm1245 = vcmp.eq.f32.partialorder %v983, %v1206
        %vm1246 = vcmp.eq.f32.partialorder %v984, %v1206
        %vm1247 = vcmp.eq.f32.partialorder %v985, %v1206
        %vm1248 = vcmp.eq.f32.partialorder %v986, %v1206
        %vm1249 = vcmp.eq.f32.partialorder %v987, %v1206
        %vm1250 = vcmp.eq.f32.partialorder %v988, %v1206
        %vm1251 = vcmp.eq.f32.partialorder %v989, %v1206
        %vm1252 = vcmp.eq.f32.partialorder %v990, %v1206
        %vm1253 = vcmp.eq.f32.partialorder %v991, %v1206
        %vm1254 = vcmp.eq.f32.partialorder %v992, %v1206
        %vm1255 = vcmp.eq.f32.partialorder %v993, %v1206
        %v1256 = vsel %vm1208, 1, 0
        %v1257 = vsel %vm1209, 1, 0
        %v1258 = vsel %vm1210, 1, 0
        %v1259 = vsel %vm1211, 1, 0
        %v1260 = vsel %vm1212, 1, 0
        %v1261 = vsel %vm1213, 1, 0
        %v1262 = vsel %vm1214, 1, 0
        %v1263 = vsel %vm1215, 1, 0
        %v1264 = vsel %vm1216, 1, 0
        %v1265 = vsel %vm1217, 1, 0
        %v1266 = vsel %vm1218, 1, 0
        %v1267 = vsel %vm1219, 1, 0
        %v1268 = vsel %vm1220, 1, 0
        %v1269 = vsel %vm1221, 1, 0
        %v1270 = vsel %vm1222, 1, 0
        %v1271 = vsel %vm1223, 1, 0
        %v1272 = vsel %vm1224, 1, 0
        %v1273 = vsel %vm1225, 1, 0
        %v1274 = vsel %vm1226, 1, 0
        %v1275 = vsel %vm1227, 1, 0
        %v1276 = vsel %vm1228, 1, 0
        %v1277 = vsel %vm1229, 1, 0
        %v1278 = vsel %vm1230, 1, 0
        %v1279 = vsel %vm1231, 1, 0
        %v1280 = vsel %vm1232, 1, 0
        %v1281 = vsel %vm1233, 1, 0
        %v1282 = vsel %vm1234, 1, 0
        %v1283 = vsel %vm1235, 1, 0
        %v1284 = vsel %vm1236, 1, 0
        %v1285 = vsel %vm1237, 1, 0
        %v1286 = vsel %vm1238, 1, 0
        %v1287 = vsel %vm1239, 1, 0
        %v1288 = vsel %vm1240, 1, 0
        %v1289 = vsel %vm1241, 1, 0
        %v1290 = vsel %vm1242, 1, 0
        %v1291 = vsel %vm1243, 1, 0
        %v1292 = vsel %vm1244, 1, 0
        %v1293 = vsel %vm1245, 1, 0
        %v1294 = vsel %vm1246, 1, 0
        %v1295 = vsel %vm1247, 1, 0
        %v1296 = vsel %vm1248, 1, 0
        %v1297 = vsel %vm1249, 1, 0
        %v1298 = vsel %vm1250, 1, 0
        %v1299 = vsel %vm1251, 1, 0
        %v1300 = vsel %vm1252, 1, 0
        %v1301 = vsel %vm1253, 1, 0
        %v1302 = vsel %vm1254, 1, 0
        %v1303 = vsel %vm1255, 1, 0
        %v1304 = vcvt.s32.f32 %v1256
        %v1305 = vcvt.s32.f32 %v1257
        %v1306 = vcvt.s32.f32 %v1258
        %v1307 = vcvt.s32.f32 %v1259
        %v1308 = vcvt.s32.f32 %v1260
        %v1309 = vcvt.s32.f32 %v1261
        %v1310 = vcvt.s32.f32 %v1262
        %v1311 = vcvt.s32.f32 %v1263
        %v1312 = vcvt.s32.f32 %v1264
        %v1313 = vcvt.s32.f32 %v1265
        %v1314 = vcvt.s32.f32 %v1266
        %v1315 = vcvt.s32.f32 %v1267
        %v1316 = vcvt.s32.f32 %v1268
        %v1317 = vcvt.s32.f32 %v1269
        %v1318 = vcvt.s32.f32 %v1270
        %v1319 = vcvt.s32.f32 %v1271
        %v1320 = vcvt.s32.f32 %v1272
        %v1321 = vcvt.s32.f32 %v1273
        %v1322 = vcvt.s32.f32 %v1274
        %v1323 = vcvt.s32.f32 %v1275
        %v1324 = vcvt.s32.f32 %v1276
        %v1325 = vcvt.s32.f32 %v1277
        %v1326 = vcvt.s32.f32 %v1278
        %v1327 = vcvt.s32.f32 %v1279
        %v1328 = vcvt.s32.f32 %v1280
        %v1329 = vcvt.s32.f32 %v1281
        %v1330 = vcvt.s32.f32 %v1282
        %v1331 = vcvt.s32.f32 %v1283
        %v1332 = vcvt.s32.f32 %v1284
        %v1333 = vcvt.s32.f32 %v1285
        %v1334 = vcvt.s32.f32 %v1286
        %v1335 = vcvt.s32.f32 %v1287
        %v1336 = vcvt.s32.f32 %v1288
        %v1337 = vcvt.s32.f32 %v1289
        %v1338 = vcvt.s32.f32 %v1290
        %v1339 = vcvt.s32.f32 %v1291
        %v1340 = vcvt.s32.f32 %v1292
        %v1341 = vcvt.s32.f32 %v1293
        %v1342 = vcvt.s32.f32 %v1294
        %v1343 = vcvt.s32.f32 %v1295
        %v1344 = vcvt.s32.f32 %v1296
        %v1345 = vcvt.s32.f32 %v1297
        %v1346 = vcvt.s32.f32 %v1298
        %v1347 = vcvt.s32.f32 %v1299
        %v1348 = vcvt.s32.f32 %v1300
        %v1349 = vcvt.s32.f32 %v1301
        %v1350 = vcvt.s32.f32 %v1302
        %v1351 = vcvt.s32.f32 %v1303
        %v1353 = vlaneseq
        %v1354 = vshrl.u32 %v1353, 7
        %v1355 = vsub.s32 0, %v1354
        %v1356 = vrot.slane %v943, %v1355
        %v1358 = vmul.f32 %v1304, %v1356
        %v1359 = vmul.f32 %v1305, %v1356
        %v1360 = vmul.f32 %v1306, %v1356
        %v1361 = vmul.f32 %v1307, %v1356
        %v1362 = vmul.f32 %v1308, %v1356
        %v1363 = vmul.f32 %v1309, %v1356
        %v1364 = vmul.f32 %v1310, %v1356
        %v1365 = vmul.f32 %v1311, %v1356
        %v1366 = vmul.f32 %v1312, %v1356
        %v1367 = vmul.f32 %v1313, %v1356
        %v1368 = vmul.f32 %v1314, %v1356
        %v1369 = vmul.f32 %v1315, %v1356
        %v1370 = vmul.f32 %v1316, %v1356
        %v1371 = vmul.f32 %v1317, %v1356
        %v1372 = vmul.f32 %v1318, %v1356
        %v1373 = vmul.f32 %v1319, %v1356
        %v1374 = vmul.f32 %v1320, %v1356
        %v1375 = vmul.f32 %v1321, %v1356
        %v1376 = vmul.f32 %v1322, %v1356
        %v1377 = vmul.f32 %v1323, %v1356
        %v1378 = vmul.f32 %v1324, %v1356
        %v1379 = vmul.f32 %v1325, %v1356
        %v1380 = vmul.f32 %v1326, %v1356
        %v1381 = vmul.f32 %v1327, %v1356
        %v1382 = vmul.f32 %v1328, %v1356
        %v1383 = vmul.f32 %v1329, %v1356
        %v1384 = vmul.f32 %v1330, %v1356
        %v1385 = vmul.f32 %v1331, %v1356
        %v1386 = vmul.f32 %v1332, %v1356
        %v1387 = vmul.f32 %v1333, %v1356
        %v1388 = vmul.f32 %v1334, %v1356
        %v1389 = vmul.f32 %v1335, %v1356
        %v1390 = vmul.f32 %v1336, %v1356
        %v1391 = vmul.f32 %v1337, %v1356
        %v1392 = vmul.f32 %v1338, %v1356
        %v1393 = vmul.f32 %v1339, %v1356
        %v1394 = vmul.f32 %v1340, %v1356
        %v1395 = vmul.f32 %v1341, %v1356
        %v1396 = vmul.f32 %v1342, %v1356
        %v1397 = vmul.f32 %v1343, %v1356
        %v1398 = vmul.f32 %v1344, %v1356
        %v1399 = vmul.f32 %v1345, %v1356
        %v1400 = vmul.f32 %v1346, %v1356
        %v1401 = vmul.f32 %v1347, %v1356
        %v1402 = vmul.f32 %v1348, %v1356
        %v1403 = vmul.f32 %v1349, %v1356
        %v1404 = vmul.f32 %v1350, %v1356
        %v1405 = vmul.f32 %v1351, %v1356
        %v1406 = vadd.f32 %v1153, %v1358
        %v1407 = vadd.f32 %v1154, %v1359
        %v1408 = vadd.f32 %v1155, %v1360
        %v1409 = vadd.f32 %v1156, %v1361
        %v1410 = vadd.f32 %v1157, %v1362
        %v1411 = vadd.f32 %v1158, %v1363
        %v1412 = vadd.f32 %v1159, %v1364
        %v1413 = vadd.f32 %v1160, %v1365
        %v1414 = vadd.f32 %v1161, %v1366
        %v1415 = vadd.f32 %v1162, %v1367
        %v1416 = vadd.f32 %v1163, %v1368
        %v1417 = vadd.f32 %v1164, %v1369
        %v1418 = vadd.f32 %v1165, %v1370
        %v1419 = vadd.f32 %v1166, %v1371
        %v1420 = vadd.f32 %v1167, %v1372
        %v1421 = vadd.f32 %v1168, %v1373
        %v1422 = vadd.f32 %v1169, %v1374
        %v1423 = vadd.f32 %v1170, %v1375
        %v1424 = vadd.f32 %v1171, %v1376
        %v1425 = vadd.f32 %v1172, %v1377
        %v1426 = vadd.f32 %v1173, %v1378
        %v1427 = vadd.f32 %v1174, %v1379
        %v1428 = vadd.f32 %v1175, %v1380
        %v1429 = vadd.f32 %v1176, %v1381
        %v1430 = vadd.f32 %v1177, %v1382
        %v1431 = vadd.f32 %v1178, %v1383
        %v1432 = vadd.f32 %v1179, %v1384
        %v1433 = vadd.f32 %v1180, %v1385
        %v1434 = vadd.f32 %v1181, %v1386
        %v1435 = vadd.f32 %v1182, %v1387
        %v1436 = vadd.f32 %v1183, %v1388
        %v1437 = vadd.f32 %v1184, %v1389
        %v1438 = vadd.f32 %v1185, %v1390
        %v1439 = vadd.f32 %v1186, %v1391
        %v1440 = vadd.f32 %v1187, %v1392
        %v1441 = vadd.f32 %v1188, %v1393
        %v1442 = vadd.f32 %v1189, %v1394
        %v1443 = vadd.f32 %v1190, %v1395
        %v1444 = vadd.f32 %v1191, %v1396
        %v1445 = vadd.f32 %v1192, %v1397
        %v1446 = vadd.f32 %v1193, %v1398
        %v1447 = vadd.f32 %v1194, %v1399
        %v1448 = vadd.f32 %v1195, %v1400
        %v1449 = vadd.f32 %v1196, %v1401
        %v1450 = vadd.f32 %v1197, %v1402
        %v1451 = vadd.f32 %v1198, %v1403
        %v1452 = vadd.f32 %v1199, %v1404
        %v1453 = vadd.f32 %v1200, %v1405
        %v1454 = vld [vmem:[%s3] sm:$0xff]
        %v1455 = vld [vmem:[%s3 + $0x8] sm:$0xff]
        %v1456 = vld [vmem:[%s3 + $0x10] sm:$0xff]
        %v1457 = vld [vmem:[%s3 + $0x18] sm:$0xff]
        %v1458 = vld [vmem:[%s3 + $0x20] sm:$0xff]
        %v1459 = vld [vmem:[%s3 + $0x28] sm:$0xff]
        %v1460 = vld [vmem:[%s3 + $0x30] sm:$0xff]
        %v1461 = vld [vmem:[%s3 + $0x38] sm:$0xff]
        %v1462 = vld [vmem:[%s3 + $0x40] sm:$0xff]
        %v1463 = vld [vmem:[%s3 + $0x48] sm:$0xff]
        %v1464 = vld [vmem:[%s3 + $0x50] sm:$0xff]
        %v1465 = vld [vmem:[%s3 + $0x58] sm:$0xff]
        %v1466 = vld [vmem:[%s3 + $0x60] sm:$0xff]
        %v1467 = vld [vmem:[%s3 + $0x68] sm:$0xff]
        %v1468 = vld [vmem:[%s3 + $0x70] sm:$0xff]
        %v1469 = vld [vmem:[%s3 + $0x78] sm:$0xff]
        %v1470 = vld [vmem:[%s3 + $0x80] sm:$0xff]
        %v1471 = vld [vmem:[%s3 + $0x88] sm:$0xff]
        %v1472 = vld [vmem:[%s3 + $0x90] sm:$0xff]
        %v1473 = vld [vmem:[%s3 + $0x98] sm:$0xff]
        %v1474 = vld [vmem:[%s3 + $0xa0] sm:$0xff]
        %v1475 = vld [vmem:[%s3 + $0xa8] sm:$0xff]
        %v1476 = vld [vmem:[%s3 + $0xb0] sm:$0xff]
        %v1477 = vld [vmem:[%s3 + $0xb8] sm:$0xff]
        %v1478 = vld [vmem:[%s3 + $0xc0] sm:$0xff]
        %v1479 = vld [vmem:[%s3 + $0xc8] sm:$0xff]
        %v1480 = vld [vmem:[%s3 + $0xd0] sm:$0xff]
        %v1481 = vld [vmem:[%s3 + $0xd8] sm:$0xff]
        %v1482 = vld [vmem:[%s3 + $0xe0] sm:$0xff]
        %v1483 = vld [vmem:[%s3 + $0xe8] sm:$0xff]
        %v1484 = vld [vmem:[%s3 + $0xf0] sm:$0xff]
        %v1485 = vld [vmem:[%s3 + $0xf8] sm:$0xff]
        %v1486 = vld [vmem:[%s3 + $0x100] sm:$0xff]
        %v1487 = vld [vmem:[%s3 + $0x108] sm:$0xff]
        %v1488 = vld [vmem:[%s3 + $0x110] sm:$0xff]
        %v1489 = vld [vmem:[%s3 + $0x118] sm:$0xff]
        %v1490 = vld [vmem:[%s3 + $0x120] sm:$0xff]
        %v1491 = vld [vmem:[%s3 + $0x128] sm:$0xff]
        %v1492 = vld [vmem:[%s3 + $0x130] sm:$0xff]
        %v1493 = vld [vmem:[%s3 + $0x138] sm:$0xff]
        %v1494 = vld [vmem:[%s3 + $0x140] sm:$0xff]
        %v1495 = vld [vmem:[%s3 + $0x148] sm:$0xff]
        %v1496 = vld [vmem:[%s3 + $0x150] sm:$0xff]
        %v1497 = vld [vmem:[%s3 + $0x158] sm:$0xff]
        %v1498 = vld [vmem:[%s3 + $0x160] sm:$0xff]
        %v1499 = vld [vmem:[%s3 + $0x168] sm:$0xff]
        %v1500 = vld [vmem:[%s3 + $0x170] sm:$0xff]
        %v1501 = vld [vmem:[%s3 + $0x178] sm:$0xff]
        %v1502 = vmul.f32 %v1406, %v1454
        %v1503 = vmul.f32 %v1407, %v1455
        %v1504 = vmul.f32 %v1408, %v1456
        %v1505 = vmul.f32 %v1409, %v1457
        %v1506 = vmul.f32 %v1410, %v1458
        %v1507 = vmul.f32 %v1411, %v1459
        %v1508 = vmul.f32 %v1412, %v1460
        %v1509 = vmul.f32 %v1413, %v1461
        %v1510 = vmul.f32 %v1414, %v1462
        %v1511 = vmul.f32 %v1415, %v1463
        %v1512 = vmul.f32 %v1416, %v1464
        %v1513 = vmul.f32 %v1417, %v1465
        %v1514 = vmul.f32 %v1418, %v1466
        %v1515 = vmul.f32 %v1419, %v1467
        %v1516 = vmul.f32 %v1420, %v1468
        %v1517 = vmul.f32 %v1421, %v1469
        %v1518 = vmul.f32 %v1422, %v1470
        %v1519 = vmul.f32 %v1423, %v1471
        %v1520 = vmul.f32 %v1424, %v1472
        %v1521 = vmul.f32 %v1425, %v1473
        %v1522 = vmul.f32 %v1426, %v1474
        %v1523 = vmul.f32 %v1427, %v1475
        %v1524 = vmul.f32 %v1428, %v1476
        %v1525 = vmul.f32 %v1429, %v1477
        %v1526 = vmul.f32 %v1430, %v1478
        %v1527 = vmul.f32 %v1431, %v1479
        %v1528 = vmul.f32 %v1432, %v1480
        %v1529 = vmul.f32 %v1433, %v1481
        %v1530 = vmul.f32 %v1434, %v1482
        %v1531 = vmul.f32 %v1435, %v1483
        %v1532 = vmul.f32 %v1436, %v1484
        %v1533 = vmul.f32 %v1437, %v1485
        %v1534 = vmul.f32 %v1438, %v1486
        %v1535 = vmul.f32 %v1439, %v1487
        %v1536 = vmul.f32 %v1440, %v1488
        %v1537 = vmul.f32 %v1441, %v1489
        %v1538 = vmul.f32 %v1442, %v1490
        %v1539 = vmul.f32 %v1443, %v1491
        %v1540 = vmul.f32 %v1444, %v1492
        %v1541 = vmul.f32 %v1445, %v1493
        %v1542 = vmul.f32 %v1446, %v1494
        %v1543 = vmul.f32 %v1447, %v1495
        %v1544 = vmul.f32 %v1448, %v1496
        %v1545 = vmul.f32 %v1449, %v1497
        %v1546 = vmul.f32 %v1450, %v1498
        %v1547 = vmul.f32 %v1451, %v1499
        %v1548 = vmul.f32 %v1452, %v1500
        %v1549 = vmul.f32 %v1453, %v1501
        %vm1550 = vcmask 261120
        %v1552 = vsel %vm1550, %v928, 0
        %v1555 = vsel %vm1550, %v929, 0
        %1557 = vmatprep.subr.mxu0 0.0
        %1558 = vmatpush1.msra.mxu0 0.0
        %1559 = vmatprep.subr.mxu0 0.0
        %1560 = vmatpush1.msra.mxu0 0.0
        %1561 = vmatprep.subr.mxu0 0.0
        %1562 = vmatpush1.msra.mxu0 0.0
        %1563 = vmatprep.subr.mxu0 0.0
        %1564 = vmatpush1.msra.mxu0 0.0
        %1565 = vmatprep.subr.mxu0 0.0
        %1566 = vmatpush1.msra.mxu0 0.0
        %1567 = vmatprep.subr.mxu0 0.0
        %1568 = vmatpush1.msra.mxu0 0.0
        %1569 = vmatprep.subr.mxu0 0.0
        %1570 = vmatpush1.msra.mxu0 0.0
        %1571 = vmatprep.subr.mxu0 0.0
        %1572 = vmatpush1.msra.mxu0 0.0
        %1573 = vmatprep.subr.mxu0 0.0
        %1574 = vmatpush1.msra.mxu0 0.0
        %1575 = vmatprep.subr.mxu0 0.0
        %1576 = vmatpush1.msra.mxu0 0.0
        %1577 = vmatprep.subr.mxu0 0.0
        %1578 = vmatpush1.msra.mxu0 0.0
        %1579 = vmatprep.subr.mxu0 0.0
        %1580 = vmatpush1.msra.mxu0 0.0
        %1581 = vmatprep.subr.mxu0 %v343
        %1582 = vmatpush1.msra.mxu0 %v342
        %1583 = vmatprep.subr.mxu0 %v340
        %1584 = vmatpush1.msra.mxu0 %v339
        %1585 = vmatprep.subr.mxu0 %v337
        %1586 = vmatpush1.msra.mxu0 %v336
        %1587 = vmatprep.subr.mxu0 %v334
        %1588 = vmatpush1.msra.mxu0 %v333
        %1589 = vmatprep.subr.mxu0 0.0
        %1590 = vmatpush2.msra.mxu0 0.0
        %1591 = vmatprep.subr.mxu0 0.0
        %1592 = vmatpush2.msra.mxu0 0.0
        %1593 = vmatprep.subr.mxu0 0.0
        %1594 = vmatpush2.msra.mxu0 0.0
        %1595 = vmatprep.subr.mxu0 0.0
        %1596 = vmatpush2.msra.mxu0 0.0
        %1597 = vmatprep.subr.mxu0 0.0
        %1598 = vmatpush2.msra.mxu0 0.0
        %1599 = vmatprep.subr.mxu0 0.0
        %1600 = vmatpush2.msra.mxu0 0.0
        %1601 = vmatprep.subr.mxu0 0.0
        %1602 = vmatpush2.msra.mxu0 0.0
        %1603 = vmatprep.subr.mxu0 0.0
        %1604 = vmatpush2.msra.mxu0 0.0
        %1605 = vmatprep.subr.mxu0 0.0
        %1606 = vmatpush2.msra.mxu0 0.0
        %1607 = vmatprep.subr.mxu0 0.0
        %1608 = vmatpush2.msra.mxu0 0.0
        %1609 = vmatprep.subr.mxu0 0.0
        %1610 = vmatpush2.msra.mxu0 0.0
        %1611 = vmatprep.subr.mxu0 0.0
        %1612 = vmatpush2.msra.mxu0 0.0
        %1613 = vmatprep.subr.mxu0 0.0
        %1614 = vmatpush2.msra.mxu0 0.0
        %1615 = vmatprep.subr.mxu0 0.0
        %1616 = vmatpush2.msra.mxu0 0.0
        %1617 = vmatprep.subr.mxu0 0.0
        %1618 = vmatpush2.msra.mxu0 0.0
        %1619 = vmatprep.subr.mxu0 0.0
        %1620 = vmatpush2.msra.mxu0 0.0
        %1621 = vmatprep.mubr.f32.mxu0 0.0
        %1622 = vmatmul.mubr.f32.gmra.mxu0 %v1552
        %v1623 = vpop.f32.mrf.mxu0
        %v1624 = vadd.f32 0.0, %v1623
        %v1625 = vpop.f32.mrf.mxu0
        %v1626 = vadd.f32 0.0, %v1625
        %1627 = vmatprep.mubr.f32.mxu0 0.0
        %1628 = vmatmul.mubr.f32.gmra.mxu0 %v1555
        %v1629 = vpop.f32.mrf.mxu0
        %v1630 = vadd.f32 0.0, %v1629
        %v1631 = vpop.f32.mrf.mxu0
        %v1632 = vadd.f32 0.0, %v1631
        %1633 = vdwg.mxu0
        %1634 = vmatprep.subr.mxu0 0.0
        %1635 = vmatpush1.msra.mxu0 0.0
        %1636 = vmatprep.subr.mxu0 0.0
        %1637 = vmatpush1.msra.mxu0 0.0
        %1638 = vmatprep.subr.mxu0 0.0
        %1639 = vmatpush1.msra.mxu0 0.0
        %1640 = vmatprep.subr.mxu0 0.0
        %1641 = vmatpush1.msra.mxu0 0.0
        %1642 = vmatprep.subr.mxu0 0.0
        %1643 = vmatpush1.msra.mxu0 0.0
        %1644 = vmatprep.subr.mxu0 0.0
        %1645 = vmatpush1.msra.mxu0 0.0
        %1646 = vmatprep.subr.mxu0 0.0
        %1647 = vmatpush1.msra.mxu0 0.0
        %1648 = vmatprep.subr.mxu0 0.0
        %1649 = vmatpush1.msra.mxu0 0.0
        %1650 = vmatprep.subr.mxu0 0.0
        %1651 = vmatpush1.msra.mxu0 0.0
        %1652 = vmatprep.subr.mxu0 0.0
        %1653 = vmatpush1.msra.mxu0 0.0
        %1654 = vmatprep.subr.mxu0 0.0
        %1655 = vmatpush1.msra.mxu0 0.0
        %1656 = vmatprep.subr.mxu0 0.0
        %1657 = vmatpush1.msra.mxu0 0.0
        %1658 = vmatprep.subr.mxu0 0.0
        %1659 = vmatpush1.msra.mxu0 %v344
        %1660 = vmatprep.subr.mxu0 0.0
        %1661 = vmatpush1.msra.mxu0 %v341
        %1662 = vmatprep.subr.mxu0 0.0
        %1663 = vmatpush1.msra.mxu0 %v338
        %1664 = vmatprep.subr.mxu0 0.0
        %1665 = vmatpush1.msra.mxu0 %v335
        %1666 = vmatprep.subr.mxu0 0.0
        %1667 = vmatpush2.msra.mxu0 0.0
        %1668 = vmatprep.subr.mxu0 0.0
        %1669 = vmatpush2.msra.mxu0 0.0
        %1670 = vmatprep.subr.mxu0 0.0
        %1671 = vmatpush2.msra.mxu0 0.0
        %1672 = vmatprep.subr.mxu0 0.0
        %1673 = vmatpush2.msra.mxu0 0.0
        %1674 = vmatprep.subr.mxu0 0.0
        %1675 = vmatpush2.msra.mxu0 0.0
        %1676 = vmatprep.subr.mxu0 0.0
        %1677 = vmatpush2.msra.mxu0 0.0
        %1678 = vmatprep.subr.mxu0 0.0
        %1679 = vmatpush2.msra.mxu0 0.0
        %1680 = vmatprep.subr.mxu0 0.0
        %1681 = vmatpush2.msra.mxu0 0.0
        %1682 = vmatprep.subr.mxu0 0.0
        %1683 = vmatpush2.msra.mxu0 0.0
        %1684 = vmatprep.subr.mxu0 0.0
        %1685 = vmatpush2.msra.mxu0 0.0
        %1686 = vmatprep.subr.mxu0 0.0
        %1687 = vmatpush2.msra.mxu0 0.0
        %1688 = vmatprep.subr.mxu0 0.0
        %1689 = vmatpush2.msra.mxu0 0.0
        %1690 = vmatprep.subr.mxu0 0.0
        %1691 = vmatpush2.msra.mxu0 0.0
        %1692 = vmatprep.subr.mxu0 0.0
        %1693 = vmatpush2.msra.mxu0 0.0
        %1694 = vmatprep.subr.mxu0 0.0
        %1695 = vmatpush2.msra.mxu0 0.0
        %1696 = vmatprep.subr.mxu0 0.0
        %1697 = vmatpush2.msra.mxu0 0.0
        %1698 = vmatprep.mubr.f32.mxu0 0.0
        %1699 = vmatmul.mubr.f32.gmra.mxu0 %v1552
        %v1700 = vpop.f32.mrf.mxu0
        %v1701 = vadd.f32 0.0, %v1700
        %v1702 = vpop.f32.mrf.mxu0
        %1703 = vmatprep.mubr.f32.mxu0 0.0
        %1704 = vmatmul.mubr.f32.gmra.mxu0 %v1555
        %v1705 = vpop.f32.mrf.mxu0
        %v1706 = vadd.f32 0.0, %v1705
        %v1707 = vpop.f32.mrf.mxu0
        %1708 = vdwg.mxu0
        %1709 = vmatprep.subr.mxu0 0.0
        %1710 = vmatpush1.msra.mxu0 %v1517
        %1711 = vmatprep.subr.mxu0 0.0
        %1712 = vmatpush1.msra.mxu0 %v1516
        %1713 = vmatprep.subr.mxu0 0.0
        %1714 = vmatpush1.msra.mxu0 %v1515
        %1715 = vmatprep.subr.mxu0 0.0
        %1716 = vmatpush1.msra.mxu0 %v1514
        %1717 = vmatprep.subr.mxu0 0.0
        %1718 = vmatpush1.msra.mxu0 %v1513
        %1719 = vmatprep.subr.mxu0 0.0
        %1720 = vmatpush1.msra.mxu0 %v1512
        %1721 = vmatprep.subr.mxu0 0.0
        %1722 = vmatpush1.msra.mxu0 %v1511
        %1723 = vmatprep.subr.mxu0 0.0
        %1724 = vmatpush1.msra.mxu0 %v1510
        %1725 = vmatprep.subr.mxu0 0.0
        %1726 = vmatpush1.msra.mxu0 %v1509
        %1727 = vmatprep.subr.mxu0 0.0
        %1728 = vmatpush1.msra.mxu0 %v1508
        %1729 = vmatprep.subr.mxu0 0.0
        %1730 = vmatpush1.msra.mxu0 %v1507
        %1731 = vmatprep.subr.mxu0 0.0
        %1732 = vmatpush1.msra.mxu0 %v1506
        %1733 = vmatprep.subr.mxu0 0.0
        %1734 = vmatpush1.msra.mxu0 %v1505
        %1735 = vmatprep.subr.mxu0 0.0
        %1736 = vmatpush1.msra.mxu0 %v1504
        %1737 = vmatprep.subr.mxu0 0.0
        %1738 = vmatpush1.msra.mxu0 %v1503
        %1739 = vmatprep.subr.mxu0 0.0
        %1740 = vmatpush1.msra.mxu0 %v1502
        %1741 = vmatprep.subr.mxu0 0.0
        %1742 = vmatpush2.msra.mxu0 %v1533
        %1743 = vmatprep.subr.mxu0 0.0
        %1744 = vmatpush2.msra.mxu0 %v1532
        %1745 = vmatprep.subr.mxu0 0.0
        %1746 = vmatpush2.msra.mxu0 %v1531
        %1747 = vmatprep.subr.mxu0 0.0
        %1748 = vmatpush2.msra.mxu0 %v1530
        %1749 = vmatprep.subr.mxu0 0.0
        %1750 = vmatpush2.msra.mxu0 %v1529
        %1751 = vmatprep.subr.mxu0 0.0
        %1752 = vmatpush2.msra.mxu0 %v1528
        %1753 = vmatprep.subr.mxu0 0.0
        %1754 = vmatpush2.msra.mxu0 %v1527
        %1755 = vmatprep.subr.mxu0 0.0
        %1756 = vmatpush2.msra.mxu0 %v1526
        %1757 = vmatprep.subr.mxu0 0.0
        %1758 = vmatpush2.msra.mxu0 %v1525
        %1759 = vmatprep.subr.mxu0 0.0
        %1760 = vmatpush2.msra.mxu0 %v1524
        %1761 = vmatprep.subr.mxu0 0.0
        %1762 = vmatpush2.msra.mxu0 %v1523
        %1763 = vmatprep.subr.mxu0 0.0
        %1764 = vmatpush2.msra.mxu0 %v1522
        %1765 = vmatprep.subr.mxu0 0.0
        %1766 = vmatpush2.msra.mxu0 %v1521
        %1767 = vmatprep.subr.mxu0 0.0
        %1768 = vmatpush2.msra.mxu0 %v1520
        %1769 = vmatprep.subr.mxu0 0.0
        %1770 = vmatpush2.msra.mxu0 %v1519
        %1771 = vmatprep.subr.mxu0 0.0
        %1772 = vmatpush2.msra.mxu0 %v1518
        %1773 = vmatprep.mubr.f32.mxu0 %v1626
        %1774 = vmatmul.mubr.f32.gmra.mxu0 %v1624
        %v1775 = vpop.f32.mrf.mxu0
        %v1776 = vadd.f32 0.0, %v1775
        %v1777 = vpop.f32.mrf.mxu0
        %1778 = vmatprep.mubr.f32.mxu0 %v1632
        %1779 = vmatmul.mubr.f32.gmra.mxu0 %v1630
        %v1780 = vpop.f32.mrf.mxu0
        %v1781 = vadd.f32 0.0, %v1780
        %v1782 = vpop.f32.mrf.mxu0
        %1783 = vdwg.mxu0
        %1784 = vmatprep.subr.mxu0 0.0
        %1785 = vmatpush1.msra.mxu0 %v1549
        %1786 = vmatprep.subr.mxu0 0.0
        %1787 = vmatpush1.msra.mxu0 %v1548
        %1788 = vmatprep.subr.mxu0 0.0
        %1789 = vmatpush1.msra.mxu0 %v1547
        %1790 = vmatprep.subr.mxu0 0.0
        %1791 = vmatpush1.msra.mxu0 %v1546
        %1792 = vmatprep.subr.mxu0 0.0
        %1793 = vmatpush1.msra.mxu0 %v1545
        %1794 = vmatprep.subr.mxu0 0.0
        %1795 = vmatpush1.msra.mxu0 %v1544
        %1796 = vmatprep.subr.mxu0 0.0
        %1797 = vmatpush1.msra.mxu0 %v1543
        %1798 = vmatprep.subr.mxu0 0.0
        %1799 = vmatpush1.msra.mxu0 %v1542
        %1800 = vmatprep.subr.mxu0 0.0
        %1801 = vmatpush1.msra.mxu0 %v1541
        %1802 = vmatprep.subr.mxu0 0.0
        %1803 = vmatpush1.msra.mxu0 %v1540
        %1804 = vmatprep.subr.mxu0 0.0
        %1805 = vmatpush1.msra.mxu0 %v1539
        %1806 = vmatprep.subr.mxu0 0.0
        %1807 = vmatpush1.msra.mxu0 %v1538
        %1808 = vmatprep.subr.mxu0 0.0
        %1809 = vmatpush1.msra.mxu0 %v1537
        %1810 = vmatprep.subr.mxu0 0.0
        %1811 = vmatpush1.msra.mxu0 %v1536
        %1812 = vmatprep.subr.mxu0 0.0
        %1813 = vmatpush1.msra.mxu0 %v1535
        %1814 = vmatprep.subr.mxu0 0.0
        %1815 = vmatpush1.msra.mxu0 %v1534
        %1816 = vmatprep.subr.mxu0 0.0
        %1817 = vmatpush2.msra.mxu0 0.0
        %1818 = vmatprep.subr.mxu0 0.0
        %1819 = vmatpush2.msra.mxu0 0.0
        %1820 = vmatprep.subr.mxu0 0.0
        %1821 = vmatpush2.msra.mxu0 0.0
        %1822 = vmatprep.subr.mxu0 0.0
        %1823 = vmatpush2.msra.mxu0 0.0
        %1824 = vmatprep.subr.mxu0 0.0
        %1825 = vmatpush2.msra.mxu0 0.0
        %1826 = vmatprep.subr.mxu0 0.0
        %1827 = vmatpush2.msra.mxu0 0.0
        %1828 = vmatprep.subr.mxu0 0.0
        %1829 = vmatpush2.msra.mxu0 0.0
        %1830 = vmatprep.subr.mxu0 0.0
        %1831 = vmatpush2.msra.mxu0 0.0
        %1832 = vmatprep.subr.mxu0 0.0
        %1833 = vmatpush2.msra.mxu0 0.0
        %1834 = vmatprep.subr.mxu0 0.0
        %1835 = vmatpush2.msra.mxu0 0.0
        %1836 = vmatprep.subr.mxu0 0.0
        %1837 = vmatpush2.msra.mxu0 0.0
        %1838 = vmatprep.subr.mxu0 0.0
        %1839 = vmatpush2.msra.mxu0 0.0
        %1840 = vmatprep.subr.mxu0 0.0
        %1841 = vmatpush2.msra.mxu0 0.0
        %1842 = vmatprep.subr.mxu0 0.0
        %1843 = vmatpush2.msra.mxu0 0.0
        %1844 = vmatprep.subr.mxu0 0.0
        %1845 = vmatpush2.msra.mxu0 0.0
        %1846 = vmatprep.subr.mxu0 0.0
        %1847 = vmatpush2.msra.mxu0 0.0
        %1848 = vmatprep.mubr.f32.mxu0 0.0
        %1849 = vmatmul.mubr.f32.gmra.mxu0 %v1701
        %v1850 = vpop.f32.mrf.mxu0
        %v1851 = vadd.f32 %v1776, %v1850
        %v1852 = vpop.f32.mrf.mxu0
        %1853 = vmatprep.mubr.f32.mxu0 0.0
        %1854 = vmatmul.mubr.f32.gmra.mxu0 %v1706
        %v1855 = vpop.f32.mrf.mxu0
        %v1856 = vadd.f32 %v1781, %v1855
        %v1857 = vpop.f32.mrf.mxu0
        %1858 = vdwg.mxu0
        %1859 = vst [vmem:[%s332] sm:$0xff] %v1851
        %1860 = vst [vmem:[%s332 + $0x8] sm:$0xff] %v1856
        %p1861 = scmp.lt.s32.totalorder %s21, 1
        %s1862 = scalar_select %p1861, %s21, 1
        %s1863 = smul.addr %s1862, 2
        %s1864 = smul.addr %s1863, 8
        %s1865 = scalar_lea.vmem %s8, %s1864
        // Predicated region
        $region61: #{retina_get_face.1} parent=51 // pred_check
          %p1866 = pneg %p212
        $region62: #{retina_get_face.1} parent=51 // pred_check_branch
          %1868 = sbr.rel (%p1866) target = $region64
        $region63: #{retina_get_face.1} parent=51 // pred_region
          _
        $region64: #{retina_get_face.1} parent=51 // pred_fallthru
          _
      $region52: #{retina_get_face.1} parent=5 // pred_fallthru
        _
      %p1869 = scmp.le.s32.totalorder 2, %s16
      // Predicated region
      $region65: #{retina_get_face.1} parent=5 // pred_check
        %p1870 = pneg %p1869
      $region66: #{retina_get_face.1} parent=5 // pred_check_branch
        %1872 = sbr.rel (%p1870) target = $region68
      $region67: #{retina_get_face.1} parent=5 // pred_region
        %s1873 = ssub.s32 %s16, 2
        // Predicated region
        $region69: #{retina_get_face.1} parent=67 // pred_check
          %p1874 = pneg %p218
        $region70: #{retina_get_face.1} parent=67 // pred_check_branch
          %1876 = sbr.rel (%p1874) target = $region72
        $region71: #{retina_get_face.1} parent=67 // pred_region
          %p1877 = scmp.lt.s32.totalorder %s22, 1
          %s1878 = scalar_select %p1877, %s22, 1
          %s1879 = smul.addr %s1878, 2
          %s1880 = smul.addr %s1879, 8
          %s1881 = scalar_lea.vmem %s8, %s1880
        $region72: #{retina_get_face.1} parent=67 // pred_fallthru
          _
      $region68: #{retina_get_face.1} parent=5 // pred_fallthru
        _
    $region6: #{retina_get_face.1} parent=1 // loop_footer
      %s20 = sadd.s32 1, %s16
    $region7: #{retina_get_face.1} parent=1 // loop_footer_branch
      %15 = sbr.rel target = $region3
    $region8: #{retina_get_face.1} parent=1 // loop_exit
      _
    %1882 = vsyncpa [#allocation3], 1
    %s1883 = scalar_lea.sflag [#allocation3], 1
    %1884 = vsyncpa %s1883, 1
    %1885 = vsyncpa [#allocation5], 1

</llo_original>
